<compile_context>
chip_gen: v6e
topology: v6e:2x2x1
jax: 0.10.0
libtpu: 0.0.40
codegen_flags: <defaults>
</compile_context>

<pallas_src>
import functools

import jax
import jax.numpy as jnp
from jax.experimental import pallas as pl
from jax.experimental.pallas import tpu as pltpu

BN_EPS = 1e-5


def _predictor_kernel(x_ref, w1_ref, gamma_ref, beta_ref, w2_ref, b2_ref,
                      o_ref, *scratch, batch_size, tile_b, x_resident,
                      cache_h):
    if cache_h:
        h_cache, sum_ref, sumsq_ref = scratch
    else:
        sum_ref, sumsq_ref = scratch

    sweep = pl.program_id(0)          # 0 = stats pass, 1 = normalize+project
    tile = pl.program_id(1)
    row0 = pl.multiple_of(tile * tile_b, tile_b)

    def compute_h():
        # Linear 1 on the MXU: bf16 operands (cast in-kernel), f32 accumulate.
        # Pre-BN bias omitted: exactly cancelled by batch-mean subtraction.
        if x_resident:
            xt = x_ref[pl.ds(row0, tile_b), :]
        else:
            xt = x_ref[...]
        return jnp.dot(xt.astype(jnp.bfloat16), w1_ref[...],
                       preferred_element_type=jnp.float32)

    @pl.when(sweep == 0)
    def _stats_pass():
        h = compute_h()                                      # [TILE_B, H] f32
        if cache_h:
            h_cache[pl.ds(row0, tile_b), :] = h

        @pl.when(tile == 0)
        def _init():
            sum_ref[...] = jnp.zeros_like(sum_ref)
            sumsq_ref[...] = jnp.zeros_like(sumsq_ref)

        sum_ref[...] += jnp.sum(h, axis=0, keepdims=True)
        sumsq_ref[...] += jnp.sum(h * h, axis=0, keepdims=True)

    @pl.when(sweep == 1)
    def _project_pass():
        @pl.when(tile == 0)
        def _fold_stats():
            # Hoisted BN finalize: fold (mean, var, gamma, beta) into a single
            # per-feature (scale, shift); overwrite the stats scratch with it
            # so every later tile only does one FMA + ReLU.
            inv_n = jnp.float32(1.0 / batch_size)
            mean = sum_ref[...] * inv_n
            var = jnp.maximum(sumsq_ref[...] * inv_n - mean * mean, 0.0)
            inv_std = jax.lax.rsqrt(var + BN_EPS)
            scale = gamma_ref[...] * inv_std
            shift = beta_ref[...] - mean * scale
            sum_ref[...] = scale
            sumsq_ref[...] = shift

        if cache_h:
            h = h_cache[pl.ds(row0, tile_b), :]
        else:
            h = compute_h()
        a = jnp.maximum(h * sum_ref[...] + sumsq_ref[...], 0.0)  # BN + ReLU
        out = jnp.dot(a.astype(jnp.bfloat16), w2_ref[...],
                      preferred_element_type=jnp.float32)        # [TILE_B, D]
        o_ref[...] = (out + b2_ref[...]).astype(o_ref.dtype)


def _round_up(x, m):
    return (x + m - 1) // m * m


def _pad_to(a, shape):
    pads = [(0, t - s) for s, t in zip(a.shape, shape)]
    if all(p == (0, 0) for p in pads):
        return a
    return jnp.pad(a, pads)


def _pick_tile_b(batch, target):
    """Largest divisor of `batch` that is a multiple of 16 (fallback 8) and
    <= target; falls back to `batch` itself for awkward batch sizes."""
    target = max(16, min(target, batch))
    for step in (16, 8):
        t = target - target % step
        while t >= step:
            if batch % t == 0:
                return t
            t -= step
    return batch


def _vmem_capacity_bytes():
    try:
        return int(pltpu.get_tpu_info().vmem_capacity_bytes)
    except Exception:          # info query unavailable on this host/version
        return 64 << 20        # conservative: v7x physical VMEM per core


def predictor_forward(x, w1, gamma, beta, w2, b2, *, tile_b=None):
    """BYOL predictor head: Linear(D,H) -> BatchNorm1d(H) -> ReLU -> Linear(H,Dout).

    x: [B, D] f32.  w1: [D, H], gamma/beta: [H] or [1, H], w2: [H, Dout],
    b2: [Dout] or [1, Dout].  Training-mode BatchNorm (batch statistics).
    """
    B, D_in = x.shape
    H = w1.shape[1]
    D_out = w2.shape[1]

    # Lane-dense padding (exact): zero-pad D_in/H/D_out to multiples of 128.
    # Padded h features see gamma=beta=0 and zero w2 rows -> contribute 0;
    # padded output columns are sliced off below.
    Dp, Hp, Dop = _round_up(D_in, 128), _round_up(H, 128), _round_up(D_out, 128)
    xp = _pad_to(x, (B, Dp))                                   # stays f32
    w1p = _pad_to(w1, (Dp, Hp)).astype(jnp.bfloat16)
    w2p = _pad_to(w2, (Hp, Dop)).astype(jnp.bfloat16)
    gp = _pad_to(jnp.asarray(gamma).reshape(1, H), (1, Hp))
    btp = _pad_to(jnp.asarray(beta).reshape(1, H), (1, Hp))
    b2p = _pad_to(jnp.asarray(b2).reshape(1, D_out), (1, Dop))

    # ---------------- VMEM plan ----------------
    cap = _vmem_capacity_bytes()
    budget = int(cap * 0.75)                     # headroom for compiler scratch

    weight_bytes = (Dp * Hp + Hp * Dop) * 2      # bf16 w1 + w2, single-buffered
    param_bytes = (2 * Hp + Dop) * 4             # gamma, beta, b2
    stat_bytes = 2 * Hp * 4                      # sum/sumsq (-> scale/shift)

    TILE_B = _pick_tile_b(B, tile_b if tile_b is not None else 256)
    while True:
        live_bytes = 2 * TILE_B * Hp * 4         # h and a f32 intermediates
        out_bytes = 2 * TILE_B * Dop * 4         # double-buffered output tile
        x_stream_bytes = 2 * TILE_B * Dp * 4     # double-buffered f32 x tile
        base = weight_bytes + param_bytes + stat_bytes + live_bytes + out_bytes
        if base + x_stream_bytes <= budget or TILE_B <= 16:
            break
        smaller = _pick_tile_b(B, max(16, TILE_B // 2))
        if smaller >= TILE_B:
            break
        TILE_B = smaller
    n_tiles = B // TILE_B

    x_res_bytes = B * Dp * 4                     # x resident as f32, one copy
    h_cache_bytes = B * Hp * 4                   # cached sweep-0 activations
    x_resident = base + x_res_bytes <= budget
    cache_h = x_resident and (base + x_res_bytes + h_cache_bytes <= budget)
    # TODO(synk): when x / h do not fit (huge B*H, esp. v7x's 64 MiB VMEM),
    # replace the sweep-0 recompute with the Gram-matrix identity (accumulate
    # X^T X and colsum(X), derive sum/sumsq of h once) to cut sweep-0 MXU work
    # from B*D*H to B*D^2.

    footprint = (base + (x_res_bytes if x_resident else x_stream_bytes)
                 + (h_cache_bytes if cache_h else 0))
    vmem_limit = min(cap - (4 << 20),
                     max(32 << 20, int(1.25 * footprint) + (2 << 20)))

    kernel = functools.partial(_predictor_kernel, batch_size=B, tile_b=TILE_B,
                               x_resident=x_resident, cache_h=cache_h)

    scratch = []
    if cache_h:
        scratch.append(pltpu.VMEM((B, Hp), jnp.float32))
    scratch += [pltpu.VMEM((1, Hp), jnp.float32),      # sum  -> scale
                pltpu.VMEM((1, Hp), jnp.float32)]      # sumsq -> shift

    def _run(single_buffer_resident):
        res_kw = ({"pipeline_mode": pl.Buffered(1)}
                  if single_buffer_resident else {})

        def const_spec(shape):
            # Constant block index -> DMA'd once, stays VMEM-resident.
            return pl.BlockSpec(shape, lambda s, i: (0, 0), **res_kw)

        if x_resident:
            x_spec = const_spec((B, Dp))
        else:
            x_spec = pl.BlockSpec((TILE_B, Dp), lambda s, i: (i, 0))

        in_specs = [x_spec,
                    const_spec((Dp, Hp)),     # w1
                    const_spec((1, Hp)),      # gamma
                    const_spec((1, Hp)),      # beta
                    const_spec((Hp, Dop)),    # w2
                    const_spec((1, Dop))]     # b2
        # Sweep 0 pins the output block index to 0 (never written there);
        # sweep 1 visits blocks 0..n_tiles-1 in order and writes the result.
        out_specs = pl.BlockSpec((TILE_B, Dop), lambda s, i: (s * i, 0))

        return pl.pallas_call(
            kernel,
            out_shape=jax.ShapeDtypeStruct((B, Dop), x.dtype),
            grid=(2, n_tiles),
            in_specs=in_specs,
            out_specs=out_specs,
            scratch_shapes=scratch,
            compiler_params=pltpu.CompilerParams(
                # Both axes are sequential: the sweep axis is a reduction and
                # the tile axis shares the BN-stats scratch.
                # TODO(synk): on v7x split the tile axis across the two
                # TensorCores (per-core partial sum/sumsq + tiny combine).
                dimension_semantics=("arbitrary", "arbitrary"),
                vmem_limit_bytes=vmem_limit),
        )(xp, w1p, gp, btp, w2p, b2p)

    try:
        out = _run(single_buffer_resident=True)
    except Exception:
        # Graceful fallback for JAX versions without BlockSpec pipeline_mode /
        # Buffered(1) support (costs only extra VMEM for the resident operands).
        out = _run(single_buffer_resident=False)

    return out[:, :D_out] if Dop != D_out else out


def _reference(x, w1, gamma, beta, w2, b2):
    # Mirrors the kernel's bf16-operand / f32-accumulate matmuls and the
    # E[h^2] - E[h]^2 variance so the comparison is apples-to-apples.
    xb = x.astype(jnp.bfloat16)
    w1b = w1.astype(jnp.bfloat16)
    w2b = w2.astype(jnp.bfloat16)
    h = jnp.dot(xb, w1b, preferred_element_type=jnp.float32)
    mean = jnp.mean(h, axis=0, keepdims=True)
    var = jnp.mean(h * h, axis=0, keepdims=True) - mean * mean
    hn = (h - mean) * jax.lax.rsqrt(var + BN_EPS) * gamma + beta
    a = jnp.maximum(hn, 0.0)
    return jnp.dot(a.astype(jnp.bfloat16), w2b,
                   preferred_element_type=jnp.float32) + b2


if __name__ == "__main__":
    key = jax.random.PRNGKey(0)
    B, D, H = 256, 128, 256   # small BYOL-predictor-like shapes

    kx, k1, k3, k4 = jax.random.split(key, 4)
    x = jax.random.normal(kx, (B, D), dtype=jnp.float32)

    # Deterministic synthetic parameters (no checkpoint load).
    w1 = jax.random.normal(k1, (D, H), dtype=jnp.float32) * (1.0 / jnp.sqrt(D))
    gamma = jnp.full((1, H), 1.1, dtype=jnp.float32)
    beta = jnp.full((1, H), 0.05, dtype=jnp.float32)
    w2 = jax.random.normal(k3, (H, D), dtype=jnp.float32) * (1.0 / jnp.sqrt(H))
    b2 = jax.random.normal(k4, (1, D), dtype=jnp.float32) * 0.01

    # tile_b=128 (multiple of 16) exercises the multi-tile two-sweep path:
    # grid = (2, 2) with VMEM-resident x and cached h.
    out = predictor_forward(x, w1, gamma, beta, w2, b2, tile_b=128)
    out = jax.block_until_ready(out)

    ref = _reference(x, w1, gamma, beta, w2, b2)
    assert out.shape == (B, D)
    assert jnp.allclose(out, ref, atol=2e-2, rtol=2e-2), "mismatch vs reference"

    print("KERNEL_OK")
</pallas_src>

<mosaic_0001>
module attributes {stable_mosaic.version = 11 : i64} {
  func.func @_predictor_kernel(%arg0: i32, %arg1: i32, %arg2: memref<256x128xf32, #tpu.memory_space<vmem>>, %arg3: memref<128x256xbf16, #tpu.memory_space<vmem>>, %arg4: memref<1x256xf32, #tpu.memory_space<vmem>>, %arg5: memref<1x256xf32, #tpu.memory_space<vmem>>, %arg6: memref<256x128xbf16, #tpu.memory_space<vmem>>, %arg7: memref<1x128xf32, #tpu.memory_space<vmem>>, %arg8: memref<128x128xf32, #tpu.memory_space<vmem>>, %arg9: memref<256x256xf32, #tpu.memory_space<vmem>>, %arg10: memref<1x256xf32, #tpu.memory_space<vmem>>, %arg11: memref<1x256xf32, #tpu.memory_space<vmem>>) attributes {dimension_semantics = [#tpu.dimension_semantics<arbitrary>, #tpu.dimension_semantics<arbitrary>], iteration_bounds = array<i64: 2, 2>, scalar_prefetch = 0 : i64, scratch_operands = 3 : i64, tpu.core_type = #tpu.core_type<tc>, window_params = [{pipeline_mode = #tpu.pipeline_mode<synchronous>, transform_indices = @transform_0, window_bounds = array<i64: 256, 128>}, {pipeline_mode = #tpu.pipeline_mode<synchronous>, transform_indices = @transform_1, window_bounds = array<i64: 128, 256>}, {pipeline_mode = #tpu.pipeline_mode<synchronous>, transform_indices = @transform_2, window_bounds = array<i64: 1, 256>}, {pipeline_mode = #tpu.pipeline_mode<synchronous>, transform_indices = @transform_3, window_bounds = array<i64: 1, 256>}, {pipeline_mode = #tpu.pipeline_mode<synchronous>, transform_indices = @transform_4, window_bounds = array<i64: 256, 128>}, {pipeline_mode = #tpu.pipeline_mode<synchronous>, transform_indices = @transform_5, window_bounds = array<i64: 1, 128>}, {transform_indices = @transform_6, window_bounds = array<i64: 128, 128>}]} {
    %c128_i32 = arith.constant 128 : i32
    %0 = arith.muli %arg1, %c128_i32 : i32
    %1 = tpu.assume_multiple %0, 128 : i32
    %c0_i32 = arith.constant 0 : i32
    %2 = arith.cmpi eq, %arg0, %c0_i32 : i32
    %3 = arith.extui %2 : i1 to i32
    %c0_i32_0 = arith.constant 0 : i32
    %4 = arith.cmpi ne, %3, %c0_i32_0 : i32
    scf.if %4 {
      %8 = arith.index_cast %1 : i32 to index
      %c0 = arith.constant 0 : index
      %9 = vector.load %arg2[%8, %c0] : memref<256x128xf32, #tpu.memory_space<vmem>>, vector<128x128xf32>
      %10 = arith.truncf %9 : vector<128x128xf32> to vector<128x128xbf16>
      %c0_2 = arith.constant 0 : index
      %c0_3 = arith.constant 0 : index
      %11 = vector.load %arg3[%c0_2, %c0_3] : memref<128x256xbf16, #tpu.memory_space<vmem>>, vector<128x256xbf16>
      %cst = arith.constant dense<0.000000e+00> : vector<128x256xf32>
      %12 = tpu.matmul %10, %11, %cst {dimension_numbers = #tpu.dot_dimension_numbers<[1], [0], [0], [1], [0, 0, 1, 1], [], []>} : vector<128x128xbf16>, vector<128x256xbf16>, vector<128x256xf32> -> vector<128x256xf32>
      %13 = arith.index_cast %1 : i32 to index
      %c0_4 = arith.constant 0 : index
      %14 = vector.load %arg9[%13, %c0_4] : memref<256x256xf32, #tpu.memory_space<vmem>>, vector<128x256xf32>
      tpu.vector_store %arg9[%13, %c0_4], %12 {strides = array<i32>} : memref<256x256xf32, #tpu.memory_space<vmem>>, vector<128x256xf32>,
      %c0_i32_5 = arith.constant 0 : i32
      %15 = arith.cmpi eq, %arg1, %c0_i32_5 : i32
      %16 = arith.extui %15 : i1 to i32
      %c0_i32_6 = arith.constant 0 : i32
      %17 = arith.cmpi ne, %16, %c0_i32_6 : i32
      scf.if %17 {
        %cst_17 = arith.constant 0.000000e+00 : f32
        %29 = vector.broadcast %cst_17 : f32 to vector<1x256xf32>
        %c0_18 = arith.constant 0 : index
        %c0_19 = arith.constant 0 : index
        %30 = vector.load %arg10[%c0_18, %c0_19] : memref<1x256xf32, #tpu.memory_space<vmem>>, vector<1x256xf32>
        tpu.vector_store %arg10[%c0_18, %c0_19], %29 {strides = array<i32>} : memref<1x256xf32, #tpu.memory_space<vmem>>, vector<1x256xf32>,
        %cst_20 = arith.constant 0.000000e+00 : f32
        %31 = vector.broadcast %cst_20 : f32 to vector<1x256xf32>
        %c0_21 = arith.constant 0 : index
        %c0_22 = arith.constant 0 : index
        %32 = vector.load %arg11[%c0_21, %c0_22] : memref<1x256xf32, #tpu.memory_space<vmem>>, vector<1x256xf32>
        tpu.vector_store %arg11[%c0_21, %c0_22], %31 {strides = array<i32>} : memref<1x256xf32, #tpu.memory_space<vmem>>, vector<1x256xf32>,
      } else {
      }
      %c0_7 = arith.constant 0 : index
      %c0_8 = arith.constant 0 : index
      %18 = vector.load %arg10[%c0_7, %c0_8] : memref<1x256xf32, #tpu.memory_space<vmem>>, vector<1x256xf32>
      %cst_9 = arith.constant dense<0.000000e+00> : vector<256xf32>
      %19 = vector.multi_reduction <add>, %12, %cst_9 [0] : vector<128x256xf32> to vector<256xf32>
      %20 = vector.shape_cast %19 : vector<256xf32> to vector<1x256xf32>
      %21 = arith.addf %18, %20 : vector<1x256xf32>
      %c0_10 = arith.constant 0 : index
      %c0_11 = arith.constant 0 : index
      %22 = vector.load %arg10[%c0_10, %c0_11] : memref<1x256xf32, #tpu.memory_space<vmem>>, vector<1x256xf32>
      tpu.vector_store %arg10[%c0_10, %c0_11], %21 {strides = array<i32>} : memref<1x256xf32, #tpu.memory_space<vmem>>, vector<1x256xf32>,
      %c0_12 = arith.constant 0 : index
      %c0_13 = arith.constant 0 : index
      %23 = vector.load %arg11[%c0_12, %c0_13] : memref<1x256xf32, #tpu.memory_space<vmem>>, vector<1x256xf32>
      %24 = arith.mulf %12, %12 : vector<128x256xf32>
      %cst_14 = arith.constant dense<0.000000e+00> : vector<256xf32>
      %25 = vector.multi_reduction <add>, %24, %cst_14 [0] : vector<128x256xf32> to vector<256xf32>
      %26 = vector.shape_cast %25 : vector<256xf32> to vector<1x256xf32>
      %27 = arith.addf %23, %26 : vector<1x256xf32>
      %c0_15 = arith.constant 0 : index
      %c0_16 = arith.constant 0 : index
      %28 = vector.load %arg11[%c0_15, %c0_16] : memref<1x256xf32, #tpu.memory_space<vmem>>, vector<1x256xf32>
      tpu.vector_store %arg11[%c0_15, %c0_16], %27 {strides = array<i32>} : memref<1x256xf32, #tpu.memory_space<vmem>>, vector<1x256xf32>,
    } else {
    }
    %c1_i32 = arith.constant 1 : i32
    %5 = arith.cmpi eq, %arg0, %c1_i32 : i32
    %6 = arith.extui %5 : i1 to i32
    %c0_i32_1 = arith.constant 0 : i32
    %7 = arith.cmpi ne, %6, %c0_i32_1 : i32
    scf.if %7 {
      %c0_i32_2 = arith.constant 0 : i32
      %8 = arith.cmpi eq, %arg1, %c0_i32_2 : i32
      %9 = arith.extui %8 : i1 to i32
      %c0_i32_3 = arith.constant 0 : i32
      %10 = arith.cmpi ne, %9, %c0_i32_3 : i32
      scf.if %10 {
        %c0_15 = arith.constant 0 : index
        %c0_16 = arith.constant 0 : index
        %28 = vector.load %arg10[%c0_15, %c0_16] : memref<1x256xf32, #tpu.memory_space<vmem>>, vector<1x256xf32>
        %cst_17 = arith.constant 3.906250e-03 : f32
        %29 = vector.broadcast %cst_17 : f32 to vector<1x256xf32>
        %30 = arith.mulf %28, %29 : vector<1x256xf32>
        %c0_18 = arith.constant 0 : index
        %c0_19 = arith.constant 0 : index
        %31 = vector.load %arg11[%c0_18, %c0_19] : memref<1x256xf32, #tpu.memory_space<vmem>>, vector<1x256xf32>
        %cst_20 = arith.constant 3.906250e-03 : f32
        %32 = vector.broadcast %cst_20 : f32 to vector<1x256xf32>
        %33 = arith.mulf %31, %32 : vector<1x256xf32>
        %34 = arith.mulf %30, %30 : vector<1x256xf32>
        %35 = arith.subf %33, %34 : vector<1x256xf32>
        %cst_21 = arith.constant 0.000000e+00 : f32
        %36 = vector.broadcast %cst_21 : f32 to vector<1x256xf32>
        %37 = arith.maximumf %35, %36 : vector<1x256xf32>
        %cst_22 = arith.constant 9.99999974E-6 : f32
        %38 = vector.broadcast %cst_22 : f32 to vector<1x256xf32>
        %39 = arith.addf %37, %38 : vector<1x256xf32>
        %40 = math.rsqrt %39 : vector<1x256xf32>
        %c0_23 = arith.constant 0 : index
        %c0_24 = arith.constant 0 : index
        %41 = vector.load %arg4[%c0_23, %c0_24] : memref<1x256xf32, #tpu.memory_space<vmem>>, vector<1x256xf32>
        %42 = arith.mulf %41, %40 : vector<1x256xf32>
        %c0_25 = arith.constant 0 : index
        %c0_26 = arith.constant 0 : index
        %43 = vector.load %arg5[%c0_25, %c0_26] : memref<1x256xf32, #tpu.memory_space<vmem>>, vector<1x256xf32>
        %44 = arith.mulf %30, %42 : vector<1x256xf32>
        %45 = arith.subf %43, %44 : vector<1x256xf32>
        %c0_27 = arith.constant 0 : index
        %c0_28 = arith.constant 0 : index
        %46 = vector.load %arg10[%c0_27, %c0_28] : memref<1x256xf32, #tpu.memory_space<vmem>>, vector<1x256xf32>
        tpu.vector_store %arg10[%c0_27, %c0_28], %42 {strides = array<i32>} : memref<1x256xf32, #tpu.memory_space<vmem>>, vector<1x256xf32>,
        %c0_29 = arith.constant 0 : index
        %c0_30 = arith.constant 0 : index
        %47 = vector.load %arg11[%c0_29, %c0_30] : memref<1x256xf32, #tpu.memory_space<vmem>>, vector<1x256xf32>
        tpu.vector_store %arg11[%c0_29, %c0_30], %45 {strides = array<i32>} : memref<1x256xf32, #tpu.memory_space<vmem>>, vector<1x256xf32>,
      } else {
      }
      %11 = arith.index_cast %1 : i32 to index
      %c0 = arith.constant 0 : index
      %12 = vector.load %arg9[%11, %c0] : memref<256x256xf32, #tpu.memory_space<vmem>>, vector<128x256xf32>
      %c0_4 = arith.constant 0 : index
      %c0_5 = arith.constant 0 : index
      %13 = vector.load %arg10[%c0_4, %c0_5] : memref<1x256xf32, #tpu.memory_space<vmem>>, vector<1x256xf32>
      %14 = vector.broadcast %13 : vector<1x256xf32> to vector<128x256xf32>
      %15 = arith.mulf %12, %14 : vector<128x256xf32>
      %c0_6 = arith.constant 0 : index
      %c0_7 = arith.constant 0 : index
      %16 = vector.load %arg11[%c0_6, %c0_7] : memref<1x256xf32, #tpu.memory_space<vmem>>, vector<1x256xf32>
      %17 = vector.broadcast %16 : vector<1x256xf32> to vector<128x256xf32>
      %18 = arith.addf %15, %17 : vector<128x256xf32>
      %cst = arith.constant 0.000000e+00 : f32
      %19 = vector.broadcast %cst : f32 to vector<128x256xf32>
      %20 = arith.maximumf %18, %19 : vector<128x256xf32>
      %21 = arith.truncf %20 : vector<128x256xf32> to vector<128x256xbf16>
      %c0_8 = arith.constant 0 : index
      %c0_9 = arith.constant 0 : index
      %22 = vector.load %arg6[%c0_8, %c0_9] : memref<256x128xbf16, #tpu.memory_space<vmem>>, vector<256x128xbf16>
      %cst_10 = arith.constant dense<0.000000e+00> : vector<128x128xf32>
      %23 = tpu.matmul %21, %22, %cst_10 {dimension_numbers = #tpu.dot_dimension_numbers<[1], [0], [0], [1], [0, 0, 1, 1], [], []>} : vector<128x256xbf16>, vector<256x128xbf16>, vector<128x128xf32> -> vector<128x128xf32>
      %c0_11 = arith.constant 0 : index
      %c0_12 = arith.constant 0 : index
      %24 = vector.load %arg7[%c0_11, %c0_12] : memref<1x128xf32, #tpu.memory_space<vmem>>, vector<1x128xf32>
      %25 = vector.broadcast %24 : vector<1x128xf32> to vector<128x128xf32>
      %26 = arith.addf %23, %25 : vector<128x128xf32>
      %c0_13 = arith.constant 0 : index
      %c0_14 = arith.constant 0 : index
      %27 = vector.load %arg8[%c0_13, %c0_14] : memref<128x128xf32, #tpu.memory_space<vmem>>, vector<128x128xf32>
      tpu.vector_store %arg8[%c0_13, %c0_14], %26 {strides = array<i32>} : memref<128x128xf32, #tpu.memory_space<vmem>>, vector<128x128xf32>,
    } else {
    }
    return
  }
  func.func @transform_0(%arg0: i32, %arg1: i32) -> (i32, i32) {
    %c0_i32 = arith.constant 0 : i32
    %c0_i32_0 = arith.constant 0 : i32
    %c0_i32_1 = arith.constant 0 : i32
    return %c0_i32, %c0_i32_0 : i32, i32
  }
  func.func @transform_1(%arg0: i32, %arg1: i32) -> (i32, i32) {
    %c0_i32 = arith.constant 0 : i32
    %c0_i32_0 = arith.constant 0 : i32
    %c0_i32_1 = arith.constant 0 : i32
    return %c0_i32, %c0_i32_0 : i32, i32
  }
  func.func @transform_2(%arg0: i32, %arg1: i32) -> (i32, i32) {
    %c0_i32 = arith.constant 0 : i32
    %c0_i32_0 = arith.constant 0 : i32
    %c0_i32_1 = arith.constant 0 : i32
    return %c0_i32, %c0_i32_0 : i32, i32
  }
  func.func @transform_3(%arg0: i32, %arg1: i32) -> (i32, i32) {
    %c0_i32 = arith.constant 0 : i32
    %c0_i32_0 = arith.constant 0 : i32
    %c0_i32_1 = arith.constant 0 : i32
    return %c0_i32, %c0_i32_0 : i32, i32
  }
  func.func @transform_4(%arg0: i32, %arg1: i32) -> (i32, i32) {
    %c0_i32 = arith.constant 0 : i32
    %c0_i32_0 = arith.constant 0 : i32
    %c0_i32_1 = arith.constant 0 : i32
    return %c0_i32, %c0_i32_0 : i32, i32
  }
  func.func @transform_5(%arg0: i32, %arg1: i32) -> (i32, i32) {
    %c0_i32 = arith.constant 0 : i32
    %c0_i32_0 = arith.constant 0 : i32
    %c0_i32_1 = arith.constant 0 : i32
    return %c0_i32, %c0_i32_0 : i32, i32
  }
  func.func @transform_6(%arg0: i32, %arg1: i32) -> (i32, i32) {
    %0 = arith.muli %arg0, %arg1 : i32
    %c0_i32 = arith.constant 0 : i32
    %c0_i32_0 = arith.constant 0 : i32
    return %0, %c0_i32 : i32, i32
  }
}

module attributes {stable_mosaic.version = 11 : i64} {
  func.func @_predictor_kernel(%arg0: i32, %arg1: i32, %arg2: memref<256x128xf32, #tpu.memory_space<vmem>>, %arg3: memref<128x256xbf16, #tpu.memory_space<vmem>>, %arg4: memref<1x256xf32, #tpu.memory_space<vmem>>, %arg5: memref<1x256xf32, #tpu.memory_space<vmem>>, %arg6: memref<256x128xbf16, #tpu.memory_space<vmem>>, %arg7: memref<1x128xf32, #tpu.memory_space<vmem>>, %arg8: memref<128x128xf32, #tpu.memory_space<vmem>>, %arg9: memref<256x256xf32, #tpu.memory_space<vmem>>, %arg10: memref<1x256xf32, #tpu.memory_space<vmem>>, %arg11: memref<1x256xf32, #tpu.memory_space<vmem>>) attributes {dimension_semantics = [#tpu.dimension_semantics<arbitrary>, #tpu.dimension_semantics<arbitrary>], iteration_bounds = array<i64: 2, 2>, scalar_prefetch = 0 : i64, scratch_operands = 3 : i64, tpu.core_type = #tpu.core_type<tc>, window_params = [{pipeline_mode = #tpu.pipeline_mode<synchronous>, transform_indices = @transform_0, window_bounds = array<i64: 256, 128>}, {pipeline_mode = #tpu.pipeline_mode<synchronous>, transform_indices = @transform_1, window_bounds = array<i64: 128, 256>}, {pipeline_mode = #tpu.pipeline_mode<synchronous>, transform_indices = @transform_2, window_bounds = array<i64: 1, 256>}, {pipeline_mode = #tpu.pipeline_mode<synchronous>, transform_indices = @transform_3, window_bounds = array<i64: 1, 256>}, {pipeline_mode = #tpu.pipeline_mode<synchronous>, transform_indices = @transform_4, window_bounds = array<i64: 256, 128>}, {pipeline_mode = #tpu.pipeline_mode<synchronous>, transform_indices = @transform_5, window_bounds = array<i64: 1, 128>}, {transform_indices = @transform_6, window_bounds = array<i64: 128, 128>}]} {
    %c128_i32 = arith.constant 128 : i32
    %0 = arith.muli %arg1, %c128_i32 : i32
    %1 = tpu.assume_multiple %0, 128 : i32
    %c0_i32 = arith.constant 0 : i32
    %2 = arith.cmpi eq, %arg0, %c0_i32 : i32
    %3 = arith.extui %2 : i1 to i32
    %c0_i32_0 = arith.constant 0 : i32
    %4 = arith.cmpi ne, %3, %c0_i32_0 : i32
    scf.if %4 {
      %8 = arith.index_cast %1 : i32 to index
      %c0 = arith.constant 0 : index
      %9 = vector.load %arg2[%8, %c0] : memref<256x128xf32, #tpu.memory_space<vmem>>, vector<128x128xf32>
      %10 = arith.truncf %9 : vector<128x128xf32> to vector<128x128xbf16>
      %c0_2 = arith.constant 0 : index
      %c0_3 = arith.constant 0 : index
      %11 = vector.load %arg3[%c0_2, %c0_3] : memref<128x256xbf16, #tpu.memory_space<vmem>>, vector<128x256xbf16>
      %cst = arith.constant dense<0.000000e+00> : vector<128x256xf32>
      %12 = tpu.matmul %10, %11, %cst {dimension_numbers = #tpu.dot_dimension_numbers<[1], [0], [0], [1], [0, 0, 1, 1], [], []>} : vector<128x128xbf16>, vector<128x256xbf16>, vector<128x256xf32> -> vector<128x256xf32>
      %13 = arith.index_cast %1 : i32 to index
      %c0_4 = arith.constant 0 : index
      %14 = vector.load %arg9[%13, %c0_4] : memref<256x256xf32, #tpu.memory_space<vmem>>, vector<128x256xf32>
      tpu.vector_store %arg9[%13, %c0_4], %12 {strides = array<i32>} : memref<256x256xf32, #tpu.memory_space<vmem>>, vector<128x256xf32>,
      %c0_i32_5 = arith.constant 0 : i32
      %15 = arith.cmpi eq, %arg1, %c0_i32_5 : i32
      %16 = arith.extui %15 : i1 to i32
      %c0_i32_6 = arith.constant 0 : i32
      %17 = arith.cmpi ne, %16, %c0_i32_6 : i32
      scf.if %17 {
        %cst_17 = arith.constant 0.000000e+00 : f32
        %29 = vector.broadcast %cst_17 : f32 to vector<1x256xf32>
        %c0_18 = arith.constant 0 : index
        %c0_19 = arith.constant 0 : index
        %30 = vector.load %arg10[%c0_18, %c0_19] : memref<1x256xf32, #tpu.memory_space<vmem>>, vector<1x256xf32>
        tpu.vector_store %arg10[%c0_18, %c0_19], %29 {strides = array<i32>} : memref<1x256xf32, #tpu.memory_space<vmem>>, vector<1x256xf32>,
        %cst_20 = arith.constant 0.000000e+00 : f32
        %31 = vector.broadcast %cst_20 : f32 to vector<1x256xf32>
        %c0_21 = arith.constant 0 : index
        %c0_22 = arith.constant 0 : index
        %32 = vector.load %arg11[%c0_21, %c0_22] : memref<1x256xf32, #tpu.memory_space<vmem>>, vector<1x256xf32>
        tpu.vector_store %arg11[%c0_21, %c0_22], %31 {strides = array<i32>} : memref<1x256xf32, #tpu.memory_space<vmem>>, vector<1x256xf32>,
      } else {
      }
      %c0_7 = arith.constant 0 : index
      %c0_8 = arith.constant 0 : index
      %18 = vector.load %arg10[%c0_7, %c0_8] : memref<1x256xf32, #tpu.memory_space<vmem>>, vector<1x256xf32>
      %cst_9 = arith.constant dense<0.000000e+00> : vector<256xf32>
      %19 = vector.multi_reduction <add>, %12, %cst_9 [0] : vector<128x256xf32> to vector<256xf32>
      %20 = vector.shape_cast %19 : vector<256xf32> to vector<1x256xf32>
      %21 = arith.addf %18, %20 : vector<1x256xf32>
      %c0_10 = arith.constant 0 : index
      %c0_11 = arith.constant 0 : index
      %22 = vector.load %arg10[%c0_10, %c0_11] : memref<1x256xf32, #tpu.memory_space<vmem>>, vector<1x256xf32>
      tpu.vector_store %arg10[%c0_10, %c0_11], %21 {strides = array<i32>} : memref<1x256xf32, #tpu.memory_space<vmem>>, vector<1x256xf32>,
      %c0_12 = arith.constant 0 : index
      %c0_13 = arith.constant 0 : index
      %23 = vector.load %arg11[%c0_12, %c0_13] : memref<1x256xf32, #tpu.memory_space<vmem>>, vector<1x256xf32>
      %24 = arith.mulf %12, %12 : vector<128x256xf32>
      %cst_14 = arith.constant dense<0.000000e+00> : vector<256xf32>
      %25 = vector.multi_reduction <add>, %24, %cst_14 [0] : vector<128x256xf32> to vector<256xf32>
      %26 = vector.shape_cast %25 : vector<256xf32> to vector<1x256xf32>
      %27 = arith.addf %23, %26 : vector<1x256xf32>
      %c0_15 = arith.constant 0 : index
      %c0_16 = arith.constant 0 : index
      %28 = vector.load %arg11[%c0_15, %c0_16] : memref<1x256xf32, #tpu.memory_space<vmem>>, vector<1x256xf32>
      tpu.vector_store %arg11[%c0_15, %c0_16], %27 {strides = array<i32>} : memref<1x256xf32, #tpu.memory_space<vmem>>, vector<1x256xf32>,
    } else {
    }
    %c1_i32 = arith.constant 1 : i32
    %5 = arith.cmpi eq, %arg0, %c1_i32 : i32
    %6 = arith.extui %5 : i1 to i32
    %c0_i32_1 = arith.constant 0 : i32
    %7 = arith.cmpi ne, %6, %c0_i32_1 : i32
    scf.if %7 {
      %c0_i32_2 = arith.constant 0 : i32
      %8 = arith.cmpi eq, %arg1, %c0_i32_2 : i32
      %9 = arith.extui %8 : i1 to i32
      %c0_i32_3 = arith.constant 0 : i32
      %10 = arith.cmpi ne, %9, %c0_i32_3 : i32
      scf.if %10 {
        %c0_15 = arith.constant 0 : index
        %c0_16 = arith.constant 0 : index
        %28 = vector.load %arg10[%c0_15, %c0_16] : memref<1x256xf32, #tpu.memory_space<vmem>>, vector<1x256xf32>
        %cst_17 = arith.constant 3.906250e-03 : f32
        %29 = vector.broadcast %cst_17 : f32 to vector<1x256xf32>
        %30 = arith.mulf %28, %29 : vector<1x256xf32>
        %c0_18 = arith.constant 0 : index
        %c0_19 = arith.constant 0 : index
        %31 = vector.load %arg11[%c0_18, %c0_19] : memref<1x256xf32, #tpu.memory_space<vmem>>, vector<1x256xf32>
        %cst_20 = arith.constant 3.906250e-03 : f32
        %32 = vector.broadcast %cst_20 : f32 to vector<1x256xf32>
        %33 = arith.mulf %31, %32 : vector<1x256xf32>
        %34 = arith.mulf %30, %30 : vector<1x256xf32>
        %35 = arith.subf %33, %34 : vector<1x256xf32>
        %cst_21 = arith.constant 0.000000e+00 : f32
        %36 = vector.broadcast %cst_21 : f32 to vector<1x256xf32>
        %37 = arith.maximumf %35, %36 : vector<1x256xf32>
        %cst_22 = arith.constant 9.99999974E-6 : f32
        %38 = vector.broadcast %cst_22 : f32 to vector<1x256xf32>
        %39 = arith.addf %37, %38 : vector<1x256xf32>
        %40 = math.rsqrt %39 : vector<1x256xf32>
        %c0_23 = arith.constant 0 : index
        %c0_24 = arith.constant 0 : index
        %41 = vector.load %arg4[%c0_23, %c0_24] : memref<1x256xf32, #tpu.memory_space<vmem>>, vector<1x256xf32>
        %42 = arith.mulf %41, %40 : vector<1x256xf32>
        %c0_25 = arith.constant 0 : index
        %c0_26 = arith.constant 0 : index
        %43 = vector.load %arg5[%c0_25, %c0_26] : memref<1x256xf32, #tpu.memory_space<vmem>>, vector<1x256xf32>
        %44 = arith.mulf %30, %42 : vector<1x256xf32>
        %45 = arith.subf %43, %44 : vector<1x256xf32>
        %c0_27 = arith.constant 0 : index
        %c0_28 = arith.constant 0 : index
        %46 = vector.load %arg10[%c0_27, %c0_28] : memref<1x256xf32, #tpu.memory_space<vmem>>, vector<1x256xf32>
        tpu.vector_store %arg10[%c0_27, %c0_28], %42 {strides = array<i32>} : memref<1x256xf32, #tpu.memory_space<vmem>>, vector<1x256xf32>,
        %c0_29 = arith.constant 0 : index
        %c0_30 = arith.constant 0 : index
        %47 = vector.load %arg11[%c0_29, %c0_30] : memref<1x256xf32, #tpu.memory_space<vmem>>, vector<1x256xf32>
        tpu.vector_store %arg11[%c0_29, %c0_30], %45 {strides = array<i32>} : memref<1x256xf32, #tpu.memory_space<vmem>>, vector<1x256xf32>,
      } else {
      }
      %11 = arith.index_cast %1 : i32 to index
      %c0 = arith.constant 0 : index
      %12 = vector.load %arg9[%11, %c0] : memref<256x256xf32, #tpu.memory_space<vmem>>, vector<128x256xf32>
      %c0_4 = arith.constant 0 : index
      %c0_5 = arith.constant 0 : index
      %13 = vector.load %arg10[%c0_4, %c0_5] : memref<1x256xf32, #tpu.memory_space<vmem>>, vector<1x256xf32>
      %14 = vector.broadcast %13 : vector<1x256xf32> to vector<128x256xf32>
      %15 = arith.mulf %12, %14 : vector<128x256xf32>
      %c0_6 = arith.constant 0 : index
      %c0_7 = arith.constant 0 : index
      %16 = vector.load %arg11[%c0_6, %c0_7] : memref<1x256xf32, #tpu.memory_space<vmem>>, vector<1x256xf32>
      %17 = vector.broadcast %16 : vector<1x256xf32> to vector<128x256xf32>
      %18 = arith.addf %15, %17 : vector<128x256xf32>
      %cst = arith.constant 0.000000e+00 : f32
      %19 = vector.broadcast %cst : f32 to vector<128x256xf32>
      %20 = arith.maximumf %18, %19 : vector<128x256xf32>
      %21 = arith.truncf %20 : vector<128x256xf32> to vector<128x256xbf16>
      %c0_8 = arith.constant 0 : index
      %c0_9 = arith.constant 0 : index
      %22 = vector.load %arg6[%c0_8, %c0_9] : memref<256x128xbf16, #tpu.memory_space<vmem>>, vector<256x128xbf16>
      %cst_10 = arith.constant dense<0.000000e+00> : vector<128x128xf32>
      %23 = tpu.matmul %21, %22, %cst_10 {dimension_numbers = #tpu.dot_dimension_numbers<[1], [0], [0], [1], [0, 0, 1, 1], [], []>} : vector<128x256xbf16>, vector<256x128xbf16>, vector<128x128xf32> -> vector<128x128xf32>
      %c0_11 = arith.constant 0 : index
      %c0_12 = arith.constant 0 : index
      %24 = vector.load %arg7[%c0_11, %c0_12] : memref<1x128xf32, #tpu.memory_space<vmem>>, vector<1x128xf32>
      %25 = vector.broadcast %24 : vector<1x128xf32> to vector<128x128xf32>
      %26 = arith.addf %23, %25 : vector<128x128xf32>
      %c0_13 = arith.constant 0 : index
      %c0_14 = arith.constant 0 : index
      %27 = vector.load %arg8[%c0_13, %c0_14] : memref<128x128xf32, #tpu.memory_space<vmem>>, vector<128x128xf32>
      tpu.vector_store %arg8[%c0_13, %c0_14], %26 {strides = array<i32>} : memref<128x128xf32, #tpu.memory_space<vmem>>, vector<128x128xf32>,
    } else {
    }
    return
  }
  func.func @transform_0(%arg0: i32, %arg1: i32) -> (i32, i32) {
    %c0_i32 = arith.constant 0 : i32
    %c0_i32_0 = arith.constant 0 : i32
    %c0_i32_1 = arith.constant 0 : i32
    return %c0_i32, %c0_i32_0 : i32, i32
  }
  func.func @transform_1(%arg0: i32, %arg1: i32) -> (i32, i32) {
    %c0_i32 = arith.constant 0 : i32
    %c0_i32_0 = arith.constant 0 : i32
    %c0_i32_1 = arith.constant 0 : i32
    return %c0_i32, %c0_i32_0 : i32, i32
  }
  func.func @transform_2(%arg0: i32, %arg1: i32) -> (i32, i32) {
    %c0_i32 = arith.constant 0 : i32
    %c0_i32_0 = arith.constant 0 : i32
    %c0_i32_1 = arith.constant 0 : i32
    return %c0_i32, %c0_i32_0 : i32, i32
  }
  func.func @transform_3(%arg0: i32, %arg1: i32) -> (i32, i32) {
    %c0_i32 = arith.constant 0 : i32
    %c0_i32_0 = arith.constant 0 : i32
    %c0_i32_1 = arith.constant 0 : i32
    return %c0_i32, %c0_i32_0 : i32, i32
  }
  func.func @transform_4(%arg0: i32, %arg1: i32) -> (i32, i32) {
    %c0_i32 = arith.constant 0 : i32
    %c0_i32_0 = arith.constant 0 : i32
    %c0_i32_1 = arith.constant 0 : i32
    return %c0_i32, %c0_i32_0 : i32, i32
  }
  func.func @transform_5(%arg0: i32, %arg1: i32) -> (i32, i32) {
    %c0_i32 = arith.constant 0 : i32
    %c0_i32_0 = arith.constant 0 : i32
    %c0_i32_1 = arith.constant 0 : i32
    return %c0_i32, %c0_i32_0 : i32, i32
  }
  func.func @transform_6(%arg0: i32, %arg1: i32) -> (i32, i32) {
    %0 = arith.muli %arg0, %arg1 : i32
    %c0_i32 = arith.constant 0 : i32
    %c0_i32_0 = arith.constant 0 : i32
    return %0, %c0_i32 : i32, i32
  }
}

</mosaic_0001>

<llo_original>
// kernel: tpu_custom_call.1
$region0: #{tpu_custom_call.1}
  #allocation0 [shape = 'u32[]', space=smem, size = 0x4, offset = 0x4, fixed_abs, tag = 'smem constant byte address 0x4 - core index']
  #allocation1 [shape = 'u32[144,128]{1,0:T(1,128)}', space=vmem, size = 0x12000, scoped, tag = 'internal scratch']
  #allocation2 [shape = 'f32[256,256]{1,0:T(8,128)}', space=vmem, size = 0x40000, scoped, tag = 'scratch operand']
  #allocation3 [shape = 'f32[1,256]{1,0:T(1,128)}', space=vmem, size = 0x400, scoped, tag = 'scratch operand']
  #allocation4 [shape = 'f32[1,256]{1,0:T(1,128)}', space=vmem, size = 0x400, scoped, tag = 'scratch operand']
  %s0 = inlined_call_operand.hbm [shape: f32[256,128], index: 0, kind: input, shape index: {}]
  %s1 = inlined_call_operand.hbm [shape: bf16[128,256], index: 1, kind: input, shape index: {}]
  %s2 = inlined_call_operand.vmem [shape: f32[1,256], index: 2, kind: input, shape index: {}]
  %s3 = inlined_call_operand.vmem [shape: f32[1,256], index: 3, kind: input, shape index: {}]
  %s4 = inlined_call_operand.hbm [shape: bf16[256,128], index: 4, kind: input, shape index: {}]
  %s5 = inlined_call_operand.vmem [shape: f32[1,128], index: 5, kind: input, shape index: {}]
  %s6 = inlined_call_operand.hbm [shape: f32[256,128], index: 6, kind: output, shape index: {}]
  %s7 = sld [smem:[#allocation0]]
  $region85: #{tpu_custom_call.1} parent=0
    _
  %s9 = ssub.s32 1, %s7
  %s10 = scalar_select 0, %s9, %s7
  $region1: #{tpu_custom_call.1} parent=0
    #allocation5 [shape = 'u8[131072]{0}', space=vmem, size = 0x20000, scoped, tag = 'input window, operand 0, single buffered']
    #allocation6 [shape = 's32[2]{0}', space=sflag, size = 0x8, scoped, tag = 'scoped memory for tpu_custom_call.1']
    #allocation7 [shape = 's32[2]{0}', space=sflag, size = 0x8, scoped, tag = 'scoped memory for tpu_custom_call.1']
    #allocation8 [shape = 'u8[65536]{0}', space=vmem, size = 0x10000, scoped, tag = 'input window, operand 1, single buffered']
    #allocation9 [shape = 's32[1]{0}', space=sflag, size = 0x4, scoped, tag = 'scoped memory for tpu_custom_call.1']
    #allocation10 [shape = 'u8[65536]{0}', space=vmem, size = 0x10000, scoped, tag = 'input window, operand 4, single buffered']
    #allocation11 [shape = 'u8[131072]{0}', space=vmem, size = 0x20000, scoped, tag = 'output window, operand 0']
    %11 = vsyncpa [#allocation6], 0
    %12 = vsyncpa [#allocation9], 0
    %13 = vsyncpa [#allocation7], 0
    %s14 = scalar_lea.sflag [#allocation7], 1
    %15 = vsyncpa %s14, 0
    loop: start=0, step=1, limit=6
    $region2: #{tpu_custom_call.1} parent=1 // loop_pre_header
      _
    $region3: #{tpu_custom_call.1} parent=1 // loop_header
      %s17 = sphi 0, %s21
      %p18 = scmp.ge.s32.totalorder %s17, 6
      %s24 = sphi 0, %s36
      %s25 = sphi 0, %s32
      %s26 = sphi 0, %s24
      %s27 = sphi 0, %s25
      %s28 = sphi 0, %s26
      %s29 = sphi 0, %s27
      %s37 = sphi 0, %s37
      %s39 = sphi 0, %s37
      %s40 = sphi 0, %s39
      %s54 = sphi 0, %s40
      %s58 = sphi 0, %s58
      %s60 = sphi 0, %s58
      %s61 = sphi 0, %s60
      %s75 = sphi 0, %s61
      %s79 = sphi 0, %s79
      %s81 = sphi 0, %s79
      %s82 = sphi 0, %s81
      %s96 = sphi 0, %s82
      %s100 = sphi 0, %s100
      %s102 = sphi 0, %s100
      %s103 = sphi 0, %s102
      %s117 = sphi 0, %s103
      %s121 = sphi 0, %s121
      %s123 = sphi 0, %s121
      %s124 = sphi 0, %s123
      %s138 = sphi 0, %s124
      %s142 = sphi 0, %s142
      %s144 = sphi 0, %s142
      %s145 = sphi 0, %s144
      %s159 = sphi 0, %s145
      %s167 = sphi 0, %s169
      %s170 = sphi 0, %s167
      %s171 = sphi 0, %s170
      %s187 = sphi 0, %s171
    $region4: #{tpu_custom_call.1} parent=1 // loop_header_branch
      %20 = sbr.rel (%p18) target = $region8
    $region5: #{tpu_custom_call.1} parent=1 // loop_body
      %s22 = ssub.s32 %s17, 1
      %s23 = ssub.s32 %s17, 2
      %s30 = sadd.s32 1, %s25
      %p31 = scmp.ge.s32.totalorder %s30, 2
      %s32 = scalar_select %p31, 0, %s30
      %s33 = sadd.s32 1, %s24
      %s34 = scalar_select %p31, %s33, %s24
      %p35 = scmp.ge.s32.totalorder %s34, 2
      %s36 = scalar_select %p35, 0, %s34
      %s38 = sadd.s32 %s37, 1
      %p41 = scmp.eq.s32.totalorder %s17, 3
      %p42 = scmp.ne.s32.totalorder %s37, %s39
      %p43 = scmp.eq.s32.totalorder %s17, 0
      %p44 = por %p42, %p43
      %p45 = scmp.ne.s32.totalorder %s37, %s39
      %p46 = scmp.eq.s32.totalorder %s22, 3
      %p47 = por %p45, %p46
      %p48 = scmp.ne.s32.totalorder %s39, %s40
      %p49 = scmp.eq.s32.totalorder %s22, 0
      %p50 = por %p48, %p49
      %p51 = scmp.ne.s32.totalorder %s39, %s40
      %p52 = scmp.eq.s32.totalorder %s23, 3
      %p53 = por %p51, %p52
      %p55 = scmp.ne.s32.totalorder %s40, %s54
      %p56 = scmp.eq.s32.totalorder %s23, 0
      %p57 = por %p55, %p56
      %s59 = sadd.s32 %s58, 1
      %p62 = scmp.eq.s32.totalorder %s17, 3
      %p63 = scmp.ne.s32.totalorder %s58, %s60
      %p64 = scmp.eq.s32.totalorder %s17, 0
      %p65 = por %p63, %p64
      %p66 = scmp.ne.s32.totalorder %s58, %s60
      %p67 = scmp.eq.s32.totalorder %s22, 3
      %p68 = por %p66, %p67
      %p69 = scmp.ne.s32.totalorder %s60, %s61
      %p70 = scmp.eq.s32.totalorder %s22, 0
      %p71 = por %p69, %p70
      %p72 = scmp.ne.s32.totalorder %s60, %s61
      %p73 = scmp.eq.s32.totalorder %s23, 3
      %p74 = por %p72, %p73
      %p76 = scmp.ne.s32.totalorder %s61, %s75
      %p77 = scmp.eq.s32.totalorder %s23, 0
      %p78 = por %p76, %p77
      %s80 = sadd.s32 %s79, 1
      %p83 = scmp.eq.s32.totalorder %s17, 3
      %p84 = scmp.ne.s32.totalorder %s79, %s81
      %p85 = scmp.eq.s32.totalorder %s17, 0
      %p86 = por %p84, %p85
      %p87 = scmp.ne.s32.totalorder %s79, %s81
      %p88 = scmp.eq.s32.totalorder %s22, 3
      %p89 = por %p87, %p88
      %p90 = scmp.ne.s32.totalorder %s81, %s82
      %p91 = scmp.eq.s32.totalorder %s22, 0
      %p92 = por %p90, %p91
      %p93 = scmp.ne.s32.totalorder %s81, %s82
      %p94 = scmp.eq.s32.totalorder %s23, 3
      %p95 = por %p93, %p94
      %p97 = scmp.ne.s32.totalorder %s82, %s96
      %p98 = scmp.eq.s32.totalorder %s23, 0
      %p99 = por %p97, %p98
      %s101 = sadd.s32 %s100, 1
      %p104 = scmp.eq.s32.totalorder %s17, 3
      %p105 = scmp.ne.s32.totalorder %s100, %s102
      %p106 = scmp.eq.s32.totalorder %s17, 0
      %p107 = por %p105, %p106
      %p108 = scmp.ne.s32.totalorder %s100, %s102
      %p109 = scmp.eq.s32.totalorder %s22, 3
      %p110 = por %p108, %p109
      %p111 = scmp.ne.s32.totalorder %s102, %s103
      %p112 = scmp.eq.s32.totalorder %s22, 0
      %p113 = por %p111, %p112
      %p114 = scmp.ne.s32.totalorder %s102, %s103
      %p115 = scmp.eq.s32.totalorder %s23, 3
      %p116 = por %p114, %p115
      %p118 = scmp.ne.s32.totalorder %s103, %s117
      %p119 = scmp.eq.s32.totalorder %s23, 0
      %p120 = por %p118, %p119
      %s122 = sadd.s32 %s121, 1
      %p125 = scmp.eq.s32.totalorder %s17, 3
      %p126 = scmp.ne.s32.totalorder %s121, %s123
      %p127 = scmp.eq.s32.totalorder %s17, 0
      %p128 = por %p126, %p127
      %p129 = scmp.ne.s32.totalorder %s121, %s123
      %p130 = scmp.eq.s32.totalorder %s22, 3
      %p131 = por %p129, %p130
      %p132 = scmp.ne.s32.totalorder %s123, %s124
      %p133 = scmp.eq.s32.totalorder %s22, 0
      %p134 = por %p132, %p133
      %p135 = scmp.ne.s32.totalorder %s123, %s124
      %p136 = scmp.eq.s32.totalorder %s23, 3
      %p137 = por %p135, %p136
      %p139 = scmp.ne.s32.totalorder %s124, %s138
      %p140 = scmp.eq.s32.totalorder %s23, 0
      %p141 = por %p139, %p140
      %s143 = sadd.s32 %s142, 1
      %p146 = scmp.eq.s32.totalorder %s17, 3
      %p147 = scmp.ne.s32.totalorder %s142, %s144
      %p148 = scmp.eq.s32.totalorder %s17, 0
      %p149 = por %p147, %p148
      %p150 = scmp.ne.s32.totalorder %s142, %s144
      %p151 = scmp.eq.s32.totalorder %s22, 3
      %p152 = por %p150, %p151
      %p153 = scmp.ne.s32.totalorder %s144, %s145
      %p154 = scmp.eq.s32.totalorder %s22, 0
      %p155 = por %p153, %p154
      %p156 = scmp.ne.s32.totalorder %s144, %s145
      %p157 = scmp.eq.s32.totalorder %s23, 3
      %p158 = por %p156, %p157
      %p160 = scmp.ne.s32.totalorder %s145, %s159
      %p161 = scmp.eq.s32.totalorder %s23, 0
      %p162 = por %p160, %p161
      %s163 = smul.u32 %s24, %s25
      %s164 = smul.u32 %s36, %s32
      %s165 = ssub.s32 %s163, %s164
      %p166 = scmp.eq.s32.totalorder %s165, 0
      %s168 = sadd.s32 %s167, 1
      %s169 = scalar_select %p166, %s167, %s168
      %p172 = pneg %p166
      %p173 = scmp.eq.s32.totalorder %s17, 3
      %p174 = por %p172, %p173
      %p175 = scmp.ne.s32.totalorder %s167, %s170
      %p176 = scmp.eq.s32.totalorder %s17, 0
      %p177 = por %p175, %p176
      %p178 = scmp.ne.s32.totalorder %s167, %s170
      %p179 = scmp.eq.s32.totalorder %s22, 3
      %p180 = por %p178, %p179
      %p181 = scmp.ne.s32.totalorder %s170, %s171
      %p182 = scmp.eq.s32.totalorder %s22, 0
      %p183 = por %p181, %p182
      %p184 = scmp.ne.s32.totalorder %s170, %s171
      %p185 = scmp.eq.s32.totalorder %s23, 3
      %p186 = por %p184, %p185
      %p188 = scmp.ne.s32.totalorder %s171, %s187
      %p189 = scmp.eq.s32.totalorder %s23, 0
      %p190 = por %p188, %p189
      %p191 = scmp.le.s32.totalorder 1, %s17
      %p192 = scmp.lt.s32.totalorder %s17, 5
      %p193 = pnand %p191, %p192
      %p194 = pneg %p193
      // Predicated region
      $region9: #{tpu_custom_call.1} parent=5 // pred_check
        _
      $region10: #{tpu_custom_call.1} parent=5 // pred_check_branch
        %196 = sbr.rel (%p193) target = $region12
      $region11: #{tpu_custom_call.1} parent=5 // pred_region
        %s197 = ssub.s32 %s17, 1
        // Predicated region
        $region13: #{tpu_custom_call.1} parent=11 // pred_check
          %p198 = pneg %p50
        $region14: #{tpu_custom_call.1} parent=11 // pred_check_branch
          %200 = sbr.rel (%p198) target = $region16
        $region15: #{tpu_custom_call.1} parent=11 // pred_region
          %s202 = ssub.s32 4096, 4096
          %203 = vsyncadd [#allocation6], %s202
          %s204 = sshll.u32 [#allocation5], 4
          %s205 = int_to_ptr.vmem [resolvable:$true] %s204
          %210 = dma.hbm_to_vmem [thread:$0]  %s0, 4096, %s205, [#allocation6], 128, 128, 8
        $region16: #{tpu_custom_call.1} parent=11 // pred_fallthru
          _
        // Predicated region
        $region17: #{tpu_custom_call.1} parent=11 // pred_check
          %p211 = pneg %p71
        $region18: #{tpu_custom_call.1} parent=11 // pred_check_branch
          %213 = sbr.rel (%p211) target = $region20
        $region19: #{tpu_custom_call.1} parent=11 // pred_region
          %s215 = ssub.s32 2048, 2048
          %216 = vsyncadd [#allocation9], %s215
          %s217 = sshll.u32 [#allocation8], 4
          %s218 = int_to_ptr.vmem [resolvable:$true] %s217
          %223 = dma.hbm_to_vmem [thread:$0]  %s1, 2048, %s218, [#allocation9], 128, 128, 8
        $region20: #{tpu_custom_call.1} parent=11 // pred_fallthru
          _
        // Predicated region
        $region21: #{tpu_custom_call.1} parent=11 // pred_check
          %p224 = pneg %p92
        $region22: #{tpu_custom_call.1} parent=11 // pred_check_branch
          %226 = sbr.rel (%p224) target = $region24
        $region23: #{tpu_custom_call.1} parent=11 // pred_region
          _
        $region24: #{tpu_custom_call.1} parent=11 // pred_fallthru
          _
        // Predicated region
        $region25: #{tpu_custom_call.1} parent=11 // pred_check
          %p227 = pneg %p113
        $region26: #{tpu_custom_call.1} parent=11 // pred_check_branch
          %229 = sbr.rel (%p227) target = $region28
        $region27: #{tpu_custom_call.1} parent=11 // pred_region
          _
        $region28: #{tpu_custom_call.1} parent=11 // pred_fallthru
          _
        // Predicated region
        $region29: #{tpu_custom_call.1} parent=11 // pred_check
          %p230 = pneg %p134
        $region30: #{tpu_custom_call.1} parent=11 // pred_check_branch
          %232 = sbr.rel (%p230) target = $region32
        $region31: #{tpu_custom_call.1} parent=11 // pred_region
          %s234 = ssub.s32 2048, 2048
          %235 = vsyncadd [#allocation9], %s234
          %s236 = sshll.u32 [#allocation10], 4
          %s237 = int_to_ptr.vmem [resolvable:$true] %s236
          %242 = dma.hbm_to_vmem [thread:$0]  %s4, 2048, %s237, [#allocation9], 64, 64, 4
        $region32: #{tpu_custom_call.1} parent=11 // pred_fallthru
          _
        // Predicated region
        $region33: #{tpu_custom_call.1} parent=11 // pred_check
          %p243 = pneg %p155
        $region34: #{tpu_custom_call.1} parent=11 // pred_check_branch
          %245 = sbr.rel (%p243) target = $region36
        $region35: #{tpu_custom_call.1} parent=11 // pred_region
          _
        $region36: #{tpu_custom_call.1} parent=11 // pred_fallthru
          _
      $region12: #{tpu_custom_call.1} parent=5 // pred_fallthru
        _
      %p246 = scmp.lt.s32.totalorder %s17, 4
      // Predicated region
      $region37: #{tpu_custom_call.1} parent=5 // pred_check
        %p247 = pneg %p246
      $region38: #{tpu_custom_call.1} parent=5 // pred_check_branch
        %249 = sbr.rel (%p247) target = $region40
      $region39: #{tpu_custom_call.1} parent=5 // pred_region
        _
      $region40: #{tpu_custom_call.1} parent=5 // pred_fallthru
        _
      %p250 = scmp.le.s32.totalorder 1, %s17
      %p251 = scmp.lt.s32.totalorder %s17, 5
      %p252 = pnand %p250, %p251
      %p253 = pneg %p252
      // Predicated region
      $region41: #{tpu_custom_call.1} parent=5 // pred_check
        _
      $region42: #{tpu_custom_call.1} parent=5 // pred_check_branch
        %255 = sbr.rel (%p252) target = $region44
      $region43: #{tpu_custom_call.1} parent=5 // pred_region
        %s256 = ssub.s32 %s17, 1
        // Predicated region
        $region45: #{tpu_custom_call.1} parent=43 // pred_check
          %p257 = pneg %p50
        $region46: #{tpu_custom_call.1} parent=43 // pred_check_branch
          %259 = sbr.rel (%p257) target = $region48
        $region47: #{tpu_custom_call.1} parent=43 // pred_region
          %260 = dma.done [#allocation6], 4096
        $region48: #{tpu_custom_call.1} parent=43 // pred_fallthru
          _
        // Predicated region
        $region49: #{tpu_custom_call.1} parent=43 // pred_check
          %p261 = pneg %p71
        $region50: #{tpu_custom_call.1} parent=43 // pred_check_branch
          %263 = sbr.rel (%p261) target = $region52
        $region51: #{tpu_custom_call.1} parent=43 // pred_region
          %264 = dma.done [#allocation9], 2048
        $region52: #{tpu_custom_call.1} parent=43 // pred_fallthru
          _
        // Predicated region
        $region53: #{tpu_custom_call.1} parent=43 // pred_check
          %p265 = pneg %p134
        $region54: #{tpu_custom_call.1} parent=43 // pred_check_branch
          %267 = sbr.rel (%p265) target = $region56
        $region55: #{tpu_custom_call.1} parent=43 // pred_region
          %268 = dma.done [#allocation9], 2048
        $region56: #{tpu_custom_call.1} parent=43 // pred_fallthru
          _
        %p269 = pneg %p50
        %p270 = pneg %p47
        %p271 = pneg %p71
        %p272 = pneg %p68
        %p273 = pneg %p92
        %p274 = pneg %p89
        %p275 = pneg %p113
        %p276 = pneg %p110
        %p277 = pneg %p134
        %p278 = pneg %p131
        %p279 = pneg %p155
        %p280 = pneg %p152
        %p281 = pneg %p183
        %p282 = pneg %p180
        %s283 = sand.u32 %s170, 1
        %s284 = scalar_lea.sflag [#allocation7], %s283
        %s285 = sand.u32 %s170, 1
        %s286 = smul.addr %s285, 128
        %s287 = scalar_lea.vmem [#allocation11], %s286
        %s288 = smul.u32 %s26, %s27
        %s289 = smul.u32 16, %s288
        %s291 = smul.u32 %s27, 128
        %p292 = scmp.eq.s32.totalorder %s26, 0
        // Predicated region
        $region57: #{tpu_custom_call.1} parent=43 // pred_check
          %p293 = pneg %p292
        $region58: #{tpu_custom_call.1} parent=43 // pred_check_branch
          %295 = sbr.rel (%p293) target = $region60
        $region59: #{tpu_custom_call.1} parent=43 // pred_region
          %s296 = scalar_lea.vmem [#allocation5], %s291
          %v297 = vld [vmem:[%s296] sm:$0xff]
          %v298 = vld [vmem:[%s296 + $0x8] sm:$0xff]
          %v299 = vld [vmem:[%s296 + $0x10] sm:$0xff]
          %v300 = vld [vmem:[%s296 + $0x18] sm:$0xff]
          %v301 = vld [vmem:[%s296 + $0x20] sm:$0xff]
          %v302 = vld [vmem:[%s296 + $0x28] sm:$0xff]
          %v303 = vld [vmem:[%s296 + $0x30] sm:$0xff]
          %v304 = vld [vmem:[%s296 + $0x38] sm:$0xff]
          %v305 = vld [vmem:[%s296 + $0x40] sm:$0xff]
          %v306 = vld [vmem:[%s296 + $0x48] sm:$0xff]
          %v307 = vld [vmem:[%s296 + $0x50] sm:$0xff]
          %v308 = vld [vmem:[%s296 + $0x58] sm:$0xff]
          %v309 = vld [vmem:[%s296 + $0x60] sm:$0xff]
          %v310 = vld [vmem:[%s296 + $0x68] sm:$0xff]
          %v311 = vld [vmem:[%s296 + $0x70] sm:$0xff]
          %v312 = vld [vmem:[%s296 + $0x78] sm:$0xff]
          %v313 = vpack.c.bf16 %v298, %v297
          %v314 = vpack.c.bf16 %v300, %v299
          %v315 = vpack.c.bf16 %v302, %v301
          %v316 = vpack.c.bf16 %v304, %v303
          %v317 = vpack.c.bf16 %v306, %v305
          %v318 = vpack.c.bf16 %v308, %v307
          %v319 = vpack.c.bf16 %v310, %v309
          %v320 = vpack.c.bf16 %v312, %v311
          %v321 = vld [vmem:[#allocation8] sm:$0xff]
          %v322 = vld [vmem:[#allocation8 + $0x8] sm:$0xff]
          %v323 = vld [vmem:[#allocation8 + $0x10] sm:$0xff]
          %v324 = vld [vmem:[#allocation8 + $0x18] sm:$0xff]
          %v325 = vld [vmem:[#allocation8 + $0x20] sm:$0xff]
          %v326 = vld [vmem:[#allocation8 + $0x28] sm:$0xff]
          %v327 = vld [vmem:[#allocation8 + $0x30] sm:$0xff]
          %v328 = vld [vmem:[#allocation8 + $0x38] sm:$0xff]
          %v329 = vld [vmem:[#allocation8 + $0x40] sm:$0xff]
          %v330 = vld [vmem:[#allocation8 + $0x48] sm:$0xff]
          %v331 = vld [vmem:[#allocation8 + $0x50] sm:$0xff]
          %v332 = vld [vmem:[#allocation8 + $0x58] sm:$0xff]
          %v333 = vld [vmem:[#allocation8 + $0x60] sm:$0xff]
          %v334 = vld [vmem:[#allocation8 + $0x68] sm:$0xff]
          %v335 = vld [vmem:[#allocation8 + $0x70] sm:$0xff]
          %v336 = vld [vmem:[#allocation8 + $0x78] sm:$0xff]
          %v353 = vunpack.c.l.b16 %v321
          %v354 = vunpack.c.h.b16 %v321
          %v355 = vunpack.c.l.b16 %v322
          %v356 = vunpack.c.h.b16 %v322
          %v357 = vunpack.c.l.b16 %v323
          %v358 = vunpack.c.h.b16 %v323
          %v359 = vunpack.c.l.b16 %v324
          %v360 = vunpack.c.h.b16 %v324
          %v361 = vunpack.c.l.b16 %v325
          %v362 = vunpack.c.h.b16 %v325
          %v363 = vunpack.c.l.b16 %v326
          %v364 = vunpack.c.h.b16 %v326
          %v365 = vunpack.c.l.b16 %v327
          %v366 = vunpack.c.h.b16 %v327
          %v367 = vunpack.c.l.b16 %v328
          %v368 = vunpack.c.h.b16 %v328
          %v369 = vunpack.c.l.b16 %v329
          %v370 = vunpack.c.h.b16 %v329
          %v371 = vunpack.c.l.b16 %v330
          %v372 = vunpack.c.h.b16 %v330
          %v373 = vunpack.c.l.b16 %v331
          %v374 = vunpack.c.h.b16 %v331
          %v375 = vunpack.c.l.b16 %v332
          %v376 = vunpack.c.h.b16 %v332
          %v377 = vunpack.c.l.b16 %v333
          %v378 = vunpack.c.h.b16 %v333
          %v379 = vunpack.c.l.b16 %v334
          %v380 = vunpack.c.h.b16 %v334
          %v381 = vunpack.c.l.b16 %v335
          %v382 = vunpack.c.h.b16 %v335
          %v383 = vunpack.c.l.b16 %v336
          %v384 = vunpack.c.h.b16 %v336
          %v385 = vpack.c.b16 %v355, %v353
          %v386 = vpack.c.b16 %v356, %v354
          %v387 = vpack.c.b16 %v359, %v357
          %v388 = vpack.c.b16 %v360, %v358
          %v389 = vpack.c.b16 %v363, %v361
          %v390 = vpack.c.b16 %v364, %v362
          %v391 = vpack.c.b16 %v367, %v365
          %v392 = vpack.c.b16 %v368, %v366
          %v393 = vpack.c.b16 %v371, %v369
          %v394 = vpack.c.b16 %v372, %v370
          %v395 = vpack.c.b16 %v375, %v373
          %v396 = vpack.c.b16 %v376, %v374
          %v397 = vpack.c.b16 %v379, %v377
          %v398 = vpack.c.b16 %v380, %v378
          %v399 = vpack.c.b16 %v383, %v381
          %v400 = vpack.c.b16 %v384, %v382
          %417 = vmatprep.subr.bf16.mxu0 %v400
          %418 = vmatpush1.bf16.msra.mxu0 %v399
          %419 = vmatprep.subr.bf16.mxu0 %v398
          %420 = vmatpush1.bf16.msra.mxu0 %v397
          %421 = vmatprep.subr.bf16.mxu0 %v396
          %422 = vmatpush1.bf16.msra.mxu0 %v395
          %423 = vmatprep.subr.bf16.mxu0 %v394
          %424 = vmatpush1.bf16.msra.mxu0 %v393
          %425 = vmatprep.subr.bf16.mxu0 %v392
          %426 = vmatpush1.bf16.msra.mxu0 %v391
          %427 = vmatprep.subr.bf16.mxu0 %v390
          %428 = vmatpush1.bf16.msra.mxu0 %v389
          %429 = vmatprep.subr.bf16.mxu0 %v388
          %430 = vmatpush1.bf16.msra.mxu0 %v387
          %431 = vmatprep.subr.bf16.mxu0 %v386
          %432 = vmatpush1.bf16.msra.mxu0 %v385
          %433 = vmatprep.subr.bf16.mxu0 0
          %434 = vmatpush2.bf16.msra.mxu0 0
          %435 = vmatprep.subr.bf16.mxu0 0
          %436 = vmatpush2.bf16.msra.mxu0 0
          %437 = vmatprep.subr.bf16.mxu0 0
          %438 = vmatpush2.bf16.msra.mxu0 0
          %439 = vmatprep.subr.bf16.mxu0 0
          %440 = vmatpush2.bf16.msra.mxu0 0
          %441 = vmatprep.subr.bf16.mxu0 0
          %442 = vmatpush2.bf16.msra.mxu0 0
          %443 = vmatprep.subr.bf16.mxu0 0
          %444 = vmatpush2.bf16.msra.mxu0 0
          %445 = vmatprep.subr.bf16.mxu0 0
          %446 = vmatpush2.bf16.msra.mxu0 0
          %447 = vmatprep.subr.bf16.mxu0 0
          %448 = vmatpush2.bf16.msra.mxu0 0
          %449 = vmatprep.mubr.bf16.mxu0 0
          %450 = vmatmul.mubr.bf16.gmra.mxu0 %v313
          %v451 = vpop.f32.mrf.mxu0
          %v452 = vadd.f32 0.0, %v451
          %v453 = vpop.f32.mrf.mxu0
          %v454 = vadd.f32 0.0, %v453
          %v455 = vpop.f32.mrf.mxu0
          %v456 = vadd.f32 0.0, %v455
          %v457 = vpop.f32.mrf.mxu0
          %v458 = vadd.f32 0.0, %v457
          %459 = vmatprep.mubr.bf16.mxu0 0
          %460 = vmatmul.mubr.bf16.gmra.mxu0 %v314
          %v461 = vpop.f32.mrf.mxu0
          %v462 = vadd.f32 0.0, %v461
          %v463 = vpop.f32.mrf.mxu0
          %v464 = vadd.f32 0.0, %v463
          %v465 = vpop.f32.mrf.mxu0
          %v466 = vadd.f32 0.0, %v465
          %v467 = vpop.f32.mrf.mxu0
          %v468 = vadd.f32 0.0, %v467
          %469 = vmatprep.mubr.bf16.mxu0 0
          %470 = vmatmul.mubr.bf16.gmra.mxu0 %v315
          %v471 = vpop.f32.mrf.mxu0
          %v472 = vadd.f32 0.0, %v471
          %v473 = vpop.f32.mrf.mxu0
          %v474 = vadd.f32 0.0, %v473
          %v475 = vpop.f32.mrf.mxu0
          %v476 = vadd.f32 0.0, %v475
          %v477 = vpop.f32.mrf.mxu0
          %v478 = vadd.f32 0.0, %v477
          %479 = vmatprep.mubr.bf16.mxu0 0
          %480 = vmatmul.mubr.bf16.gmra.mxu0 %v316
          %v481 = vpop.f32.mrf.mxu0
          %v482 = vadd.f32 0.0, %v481
          %v483 = vpop.f32.mrf.mxu0
          %v484 = vadd.f32 0.0, %v483
          %v485 = vpop.f32.mrf.mxu0
          %v486 = vadd.f32 0.0, %v485
          %v487 = vpop.f32.mrf.mxu0
          %v488 = vadd.f32 0.0, %v487
          %489 = vmatprep.mubr.bf16.mxu0 0
          %490 = vmatmul.mubr.bf16.gmra.mxu0 %v317
          %v491 = vpop.f32.mrf.mxu0
          %v492 = vadd.f32 0.0, %v491
          %v493 = vpop.f32.mrf.mxu0
          %v494 = vadd.f32 0.0, %v493
          %v495 = vpop.f32.mrf.mxu0
          %v496 = vadd.f32 0.0, %v495
          %v497 = vpop.f32.mrf.mxu0
          %v498 = vadd.f32 0.0, %v497
          %499 = vmatprep.mubr.bf16.mxu0 0
          %500 = vmatmul.mubr.bf16.gmra.mxu0 %v318
          %v501 = vpop.f32.mrf.mxu0
          %v502 = vadd.f32 0.0, %v501
          %v503 = vpop.f32.mrf.mxu0
          %v504 = vadd.f32 0.0, %v503
          %v505 = vpop.f32.mrf.mxu0
          %v506 = vadd.f32 0.0, %v505
          %v507 = vpop.f32.mrf.mxu0
          %v508 = vadd.f32 0.0, %v507
          %509 = vmatprep.mubr.bf16.mxu0 0
          %510 = vmatmul.mubr.bf16.gmra.mxu0 %v319
          %v511 = vpop.f32.mrf.mxu0
          %v512 = vadd.f32 0.0, %v511
          %v513 = vpop.f32.mrf.mxu0
          %v514 = vadd.f32 0.0, %v513
          %v515 = vpop.f32.mrf.mxu0
          %v516 = vadd.f32 0.0, %v515
          %v517 = vpop.f32.mrf.mxu0
          %v518 = vadd.f32 0.0, %v517
          %519 = vmatprep.mubr.bf16.mxu0 0
          %520 = vmatmul.mubr.bf16.gmra.mxu0 %v320
          %v521 = vpop.f32.mrf.mxu0
          %v522 = vadd.f32 0.0, %v521
          %v523 = vpop.f32.mrf.mxu0
          %v524 = vadd.f32 0.0, %v523
          %v525 = vpop.f32.mrf.mxu0
          %v526 = vadd.f32 0.0, %v525
          %v527 = vpop.f32.mrf.mxu0
          %v528 = vadd.f32 0.0, %v527
          %529 = vdwg.mxu0
          %s530 = sshra.s32 %s291, 3
          %s531 = sand.u32 %s291, 7
          %s532 = smul.u32 %s530, 2
          %s533 = smul.addr %s532, 8
          %s534 = scalar_lea.vmem [#allocation2], %s533
          %535 = vst [vmem:[%s534] sm:$0xff] %v452
          %536 = vst [vmem:[%s534 + $0x8] sm:$0xff] %v454
          %537 = vst [vmem:[%s534 + $0x10] sm:$0xff] %v456
          %538 = vst [vmem:[%s534 + $0x18] sm:$0xff] %v458
          %539 = vst [vmem:[%s534 + $0x20] sm:$0xff] %v462
          %540 = vst [vmem:[%s534 + $0x28] sm:$0xff] %v464
          %541 = vst [vmem:[%s534 + $0x30] sm:$0xff] %v466
          %542 = vst [vmem:[%s534 + $0x38] sm:$0xff] %v468
          %543 = vst [vmem:[%s534 + $0x40] sm:$0xff] %v472
          %544 = vst [vmem:[%s534 + $0x48] sm:$0xff] %v474
          %545 = vst [vmem:[%s534 + $0x50] sm:$0xff] %v476
          %546 = vst [vmem:[%s534 + $0x58] sm:$0xff] %v478
          %547 = vst [vmem:[%s534 + $0x60] sm:$0xff] %v482
          %548 = vst [vmem:[%s534 + $0x68] sm:$0xff] %v484
          %549 = vst [vmem:[%s534 + $0x70] sm:$0xff] %v486
          %550 = vst [vmem:[%s534 + $0x78] sm:$0xff] %v488
          %551 = vst [vmem:[%s534 + $0x80] sm:$0xff] %v492
          %552 = vst [vmem:[%s534 + $0x88] sm:$0xff] %v494
          %553 = vst [vmem:[%s534 + $0x90] sm:$0xff] %v496
          %554 = vst [vmem:[%s534 + $0x98] sm:$0xff] %v498
          %555 = vst [vmem:[%s534 + $0xa0] sm:$0xff] %v502
          %556 = vst [vmem:[%s534 + $0xa8] sm:$0xff] %v504
          %557 = vst [vmem:[%s534 + $0xb0] sm:$0xff] %v506
          %558 = vst [vmem:[%s534 + $0xb8] sm:$0xff] %v508
          %559 = vst [vmem:[%s534 + $0xc0] sm:$0xff] %v512
          %560 = vst [vmem:[%s534 + $0xc8] sm:$0xff] %v514
          %561 = vst [vmem:[%s534 + $0xd0] sm:$0xff] %v516
          %562 = vst [vmem:[%s534 + $0xd8] sm:$0xff] %v518
          %563 = vst [vmem:[%s534 + $0xe0] sm:$0xff] %v522
          %564 = vst [vmem:[%s534 + $0xe8] sm:$0xff] %v524
          %565 = vst [vmem:[%s534 + $0xf0] sm:$0xff] %v526
          %566 = vst [vmem:[%s534 + $0xf8] sm:$0xff] %v528
          %p567 = scmp.eq.s32.totalorder %s27, 0
          // Predicated region
          $region61: #{tpu_custom_call.1} parent=59 // pred_check
            %p568 = pneg %p567
          $region62: #{tpu_custom_call.1} parent=59 // pred_check_branch
            %570 = sbr.rel (%p568) target = $region64
          $region63: #{tpu_custom_call.1} parent=59 // pred_region
            %v571 = vlaneseq
            %vm572 = vcmp.ge.s32.totalorder %v571, 0
            %vm573 = vcmp.lt.s32.totalorder %v571, 256
            %vm574 = vmand %vm572, %vm573
            %575 = vst.msk [vmem:[#allocation3] sm:$0x3] %vm574, 0.0
            %576 = vst.msk [vmem:[#allocation4] sm:$0x3] %vm574, 0.0
          $region64: #{tpu_custom_call.1} parent=59 // pred_fallthru
            _
          %v577 = vld [vmem:[#allocation3] sm:$0x3]
          %v578 = vadd.f32 %v452, %v456
          %v579 = vadd.f32 %v578, %v462
          %v580 = vadd.f32 %v579, %v466
          %v581 = vadd.f32 %v580, %v472
          %v582 = vadd.f32 %v581, %v476
          %v583 = vadd.f32 %v582, %v482
          %v584 = vadd.f32 %v583, %v486
          %v585 = vadd.f32 %v584, %v492
          %v586 = vadd.f32 %v585, %v496
          %v587 = vadd.f32 %v586, %v502
          %v588 = vadd.f32 %v587, %v506
          %v589 = vadd.f32 %v588, %v512
          %v590 = vadd.f32 %v589, %v516
          %v591 = vadd.f32 %v590, %v522
          %v592 = vadd.f32 %v591, %v526
          %v593 = vrot.slane %v592, 4
          %v594 = vadd.f32 %v592, %v593
          %v595 = vrot.slane %v594, 2
          %v596 = vadd.f32 %v594, %v595
          %v597 = vrot.slane %v596, 1
          %v598 = vadd.f32 %v596, %v597
          %v599 = vadd.f32 %v454, %v458
          %v600 = vadd.f32 %v599, %v464
          %v601 = vadd.f32 %v600, %v468
          %v602 = vadd.f32 %v601, %v474
          %v603 = vadd.f32 %v602, %v478
          %v604 = vadd.f32 %v603, %v484
          %v605 = vadd.f32 %v604, %v488
          %v606 = vadd.f32 %v605, %v494
          %v607 = vadd.f32 %v606, %v498
          %v608 = vadd.f32 %v607, %v504
          %v609 = vadd.f32 %v608, %v508
          %v610 = vadd.f32 %v609, %v514
          %v611 = vadd.f32 %v610, %v518
          %v612 = vadd.f32 %v611, %v524
          %v613 = vadd.f32 %v612, %v528
          %v614 = vrot.slane %v613, 4
          %v615 = vadd.f32 %v613, %v614
          %v616 = vrot.slane %v615, 2
          %v617 = vadd.f32 %v615, %v616
          %v618 = vrot.slane %v617, 1
          %v619 = vadd.f32 %v617, %v618
          %v622 = vcombine.low %v598, %v619
          %v624 = vunpack.c.l.s4 1966171168
          %v625 = vunpack.c.0.s8 %v624
          %v626 = vlaneseq
          %v627 = vshrl.u32 %v626, 7
          %v628 = vsub.s32 %v625, %v627
          %v629 = vrot.slane %v622, %v628
          %v631 = vunpack.c.l.s4 1966171168
          %v632 = vunpack.c.0.s8 %v631
          %v633 = vlaneseq
          %v634 = vshrl.u32 %v633, 7
          %v635 = vsub.s32 %v632, %v634
          %v636 = vrot.slane %v629, %v635
          %v638 = vadd.f32 %v577, %v636
          %v639 = vlaneseq
          %vm640 = vcmp.ge.s32.totalorder %v639, 0
          %vm641 = vcmp.lt.s32.totalorder %v639, 256
          %vm642 = vmand %vm640, %vm641
          %643 = vst.msk [vmem:[#allocation3] sm:$0x3] %vm642, %v638
          %v644 = vld [vmem:[#allocation4] sm:$0x3]
          %v645 = vmul.f32 %v452, %v452
          %v646 = vmul.f32 %v454, %v454
          %v647 = vmul.f32 %v456, %v456
          %v648 = vmul.f32 %v458, %v458
          %v649 = vmul.f32 %v462, %v462
          %v650 = vmul.f32 %v464, %v464
          %v651 = vmul.f32 %v466, %v466
          %v652 = vmul.f32 %v468, %v468
          %v653 = vmul.f32 %v472, %v472
          %v654 = vmul.f32 %v474, %v474
          %v655 = vmul.f32 %v476, %v476
          %v656 = vmul.f32 %v478, %v478
          %v657 = vmul.f32 %v482, %v482
          %v658 = vmul.f32 %v484, %v484
          %v659 = vmul.f32 %v486, %v486
          %v660 = vmul.f32 %v488, %v488
          %v661 = vmul.f32 %v492, %v492
          %v662 = vmul.f32 %v494, %v494
          %v663 = vmul.f32 %v496, %v496
          %v664 = vmul.f32 %v498, %v498
          %v665 = vmul.f32 %v502, %v502
          %v666 = vmul.f32 %v504, %v504
          %v667 = vmul.f32 %v506, %v506
          %v668 = vmul.f32 %v508, %v508
          %v669 = vmul.f32 %v512, %v512
          %v670 = vmul.f32 %v514, %v514
          %v671 = vmul.f32 %v516, %v516
          %v672 = vmul.f32 %v518, %v518
          %v673 = vmul.f32 %v522, %v522
          %v674 = vmul.f32 %v524, %v524
          %v675 = vmul.f32 %v526, %v526
          %v676 = vmul.f32 %v528, %v528
          %v677 = vadd.f32 %v645, %v647
          %v678 = vadd.f32 %v677, %v649
          %v679 = vadd.f32 %v678, %v651
          %v680 = vadd.f32 %v679, %v653
          %v681 = vadd.f32 %v680, %v655
          %v682 = vadd.f32 %v681, %v657
          %v683 = vadd.f32 %v682, %v659
          %v684 = vadd.f32 %v683, %v661
          %v685 = vadd.f32 %v684, %v663
          %v686 = vadd.f32 %v685, %v665
          %v687 = vadd.f32 %v686, %v667
          %v688 = vadd.f32 %v687, %v669
          %v689 = vadd.f32 %v688, %v671
          %v690 = vadd.f32 %v689, %v673
          %v691 = vadd.f32 %v690, %v675
          %v692 = vrot.slane %v691, 4
          %v693 = vadd.f32 %v691, %v692
          %v694 = vrot.slane %v693, 2
          %v695 = vadd.f32 %v693, %v694
          %v696 = vrot.slane %v695, 1
          %v697 = vadd.f32 %v695, %v696
          %v698 = vadd.f32 %v646, %v648
          %v699 = vadd.f32 %v698, %v650
          %v700 = vadd.f32 %v699, %v652
          %v701 = vadd.f32 %v700, %v654
          %v702 = vadd.f32 %v701, %v656
          %v703 = vadd.f32 %v702, %v658
          %v704 = vadd.f32 %v703, %v660
          %v705 = vadd.f32 %v704, %v662
          %v706 = vadd.f32 %v705, %v664
          %v707 = vadd.f32 %v706, %v666
          %v708 = vadd.f32 %v707, %v668
          %v709 = vadd.f32 %v708, %v670
          %v710 = vadd.f32 %v709, %v672
          %v711 = vadd.f32 %v710, %v674
          %v712 = vadd.f32 %v711, %v676
          %v713 = vrot.slane %v712, 4
          %v714 = vadd.f32 %v712, %v713
          %v715 = vrot.slane %v714, 2
          %v716 = vadd.f32 %v714, %v715
          %v717 = vrot.slane %v716, 1
          %v718 = vadd.f32 %v716, %v717
          %v721 = vcombine.low %v697, %v718
          %v723 = vunpack.c.l.s4 1966171168
          %v724 = vunpack.c.0.s8 %v723
          %v725 = vlaneseq
          %v726 = vshrl.u32 %v725, 7
          %v727 = vsub.s32 %v724, %v726
          %v728 = vrot.slane %v721, %v727
          %v730 = vunpack.c.l.s4 1966171168
          %v731 = vunpack.c.0.s8 %v730
          %v732 = vlaneseq
          %v733 = vshrl.u32 %v732, 7
          %v734 = vsub.s32 %v731, %v733
          %v735 = vrot.slane %v728, %v734
          %v737 = vadd.f32 %v644, %v735
          %738 = vst.msk [vmem:[#allocation4] sm:$0x3] %vm642, %v737
        $region60: #{tpu_custom_call.1} parent=43 // pred_fallthru
          _
        %p739 = scmp.eq.s32.totalorder %s26, 1
        // Predicated region
        $region65: #{tpu_custom_call.1} parent=43 // pred_check
          %p740 = pneg %p739
        $region66: #{tpu_custom_call.1} parent=43 // pred_check_branch
          %742 = sbr.rel (%p740) target = $region68
        $region67: #{tpu_custom_call.1} parent=43 // pred_region
          %p743 = scmp.eq.s32.totalorder %s27, 0
          // Predicated region
          $region69: #{tpu_custom_call.1} parent=67 // pred_check
            %p744 = pneg %p743
          $region70: #{tpu_custom_call.1} parent=67 // pred_check_branch
            %746 = sbr.rel (%p744) target = $region72
          $region71: #{tpu_custom_call.1} parent=67 // pred_region
            %v747 = vld [vmem:[#allocation3] sm:$0x3]
            %v748 = vmul.f32 %v747, 0.00390625
            %v749 = vld [vmem:[#allocation4] sm:$0x3]
            %v750 = vmul.f32 %v749, 0.00390625
            %v751 = vmul.f32 %v748, %v748
            %v752 = vsub.f32 %v750, %v751
            %v753 = vmax.f32 %v752, 0.0
            %v754 = vadd.f32 %v753, 1e-05
            %v755 = vrsqrt.pop %v754
            %v756 = vld [vmem:[%s2] sm:$0x3]
            %v757 = vmul.f32 %v756, %v755
            %v758 = vld [vmem:[%s3] sm:$0x3]
            %v759 = vmul.f32 %v748, %v757
            %v760 = vsub.f32 %v758, %v759
            %v761 = vlaneseq
            %vm762 = vcmp.ge.s32.totalorder %v761, 0
            %vm763 = vcmp.lt.s32.totalorder %v761, 256
            %vm764 = vmand %vm762, %vm763
            %765 = vst.msk [vmem:[#allocation3] sm:$0x3] %vm764, %v757
            %766 = vst.msk [vmem:[#allocation4] sm:$0x3] %vm764, %v760
          $region72: #{tpu_custom_call.1} parent=67 // pred_fallthru
            _
          %s767 = sshra.s32 %s291, 3
          %s768 = sand.u32 %s291, 7
          %s769 = smul.u32 %s767, 2
          %s770 = smul.addr %s769, 8
          %s771 = scalar_lea.vmem [#allocation2], %s770
          %v772 = vld [vmem:[%s771] sm:$0xff]
          %v773 = vld [vmem:[%s771 + $0x8] sm:$0xff]
          %v774 = vld [vmem:[%s771 + $0x10] sm:$0xff]
          %v775 = vld [vmem:[%s771 + $0x18] sm:$0xff]
          %v776 = vld [vmem:[%s771 + $0x20] sm:$0xff]
          %v777 = vld [vmem:[%s771 + $0x28] sm:$0xff]
          %v778 = vld [vmem:[%s771 + $0x30] sm:$0xff]
          %v779 = vld [vmem:[%s771 + $0x38] sm:$0xff]
          %v780 = vld [vmem:[%s771 + $0x40] sm:$0xff]
          %v781 = vld [vmem:[%s771 + $0x48] sm:$0xff]
          %v782 = vld [vmem:[%s771 + $0x50] sm:$0xff]
          %v783 = vld [vmem:[%s771 + $0x58] sm:$0xff]
          %v784 = vld [vmem:[%s771 + $0x60] sm:$0xff]
          %v785 = vld [vmem:[%s771 + $0x68] sm:$0xff]
          %v786 = vld [vmem:[%s771 + $0x70] sm:$0xff]
          %v787 = vld [vmem:[%s771 + $0x78] sm:$0xff]
          %v788 = vld [vmem:[%s771 + $0x80] sm:$0xff]
          %v789 = vld [vmem:[%s771 + $0x88] sm:$0xff]
          %v790 = vld [vmem:[%s771 + $0x90] sm:$0xff]
          %v791 = vld [vmem:[%s771 + $0x98] sm:$0xff]
          %v792 = vld [vmem:[%s771 + $0xa0] sm:$0xff]
          %v793 = vld [vmem:[%s771 + $0xa8] sm:$0xff]
          %v794 = vld [vmem:[%s771 + $0xb0] sm:$0xff]
          %v795 = vld [vmem:[%s771 + $0xb8] sm:$0xff]
          %v796 = vld [vmem:[%s771 + $0xc0] sm:$0xff]
          %v797 = vld [vmem:[%s771 + $0xc8] sm:$0xff]
          %v798 = vld [vmem:[%s771 + $0xd0] sm:$0xff]
          %v799 = vld [vmem:[%s771 + $0xd8] sm:$0xff]
          %v800 = vld [vmem:[%s771 + $0xe0] sm:$0xff]
          %v801 = vld [vmem:[%s771 + $0xe8] sm:$0xff]
          %v802 = vld [vmem:[%s771 + $0xf0] sm:$0xff]
          %v803 = vld [vmem:[%s771 + $0xf8] sm:$0xff]
          %v804 = vld [vmem:[#allocation3] sm:$0x3]
          %v806 = vlaneseq
          %v807 = vshrl.u32 %v806, 7
          %v808 = vsub.s32 0, %v807
          %v809 = vrot.slane %v804, %v808
          %v810 = vlaneseq
          %v811 = vshrl.u32 %v810, 7
          %v812 = vsub.s32 1, %v811
          %v813 = vrot.slane %v804, %v812
          %v816 = vmul.f32 %v772, %v809
          %v817 = vmul.f32 %v773, %v813
          %v818 = vmul.f32 %v774, %v809
          %v819 = vmul.f32 %v775, %v813
          %v820 = vmul.f32 %v776, %v809
          %v821 = vmul.f32 %v777, %v813
          %v822 = vmul.f32 %v778, %v809
          %v823 = vmul.f32 %v779, %v813
          %v824 = vmul.f32 %v780, %v809
          %v825 = vmul.f32 %v781, %v813
          %v826 = vmul.f32 %v782, %v809
          %v827 = vmul.f32 %v783, %v813
          %v828 = vmul.f32 %v784, %v809
          %v829 = vmul.f32 %v785, %v813
          %v830 = vmul.f32 %v786, %v809
          %v831 = vmul.f32 %v787, %v813
          %v832 = vmul.f32 %v788, %v809
          %v833 = vmul.f32 %v789, %v813
          %v834 = vmul.f32 %v790, %v809
          %v835 = vmul.f32 %v791, %v813
          %v836 = vmul.f32 %v792, %v809
          %v837 = vmul.f32 %v793, %v813
          %v838 = vmul.f32 %v794, %v809
          %v839 = vmul.f32 %v795, %v813
          %v840 = vmul.f32 %v796, %v809
          %v841 = vmul.f32 %v797, %v813
          %v842 = vmul.f32 %v798, %v809
          %v843 = vmul.f32 %v799, %v813
          %v844 = vmul.f32 %v800, %v809
          %v845 = vmul.f32 %v801, %v813
          %v846 = vmul.f32 %v802, %v809
          %v847 = vmul.f32 %v803, %v813
          %v848 = vld [vmem:[#allocation4] sm:$0x3]
          %v850 = vlaneseq
          %v851 = vshrl.u32 %v850, 7
          %v852 = vsub.s32 0, %v851
          %v853 = vrot.slane %v848, %v852
          %v854 = vlaneseq
          %v855 = vshrl.u32 %v854, 7
          %v856 = vsub.s32 1, %v855
          %v857 = vrot.slane %v848, %v856
          %v860 = vadd.f32 %v816, %v853
          %v861 = vadd.f32 %v817, %v857
          %v862 = vadd.f32 %v818, %v853
          %v863 = vadd.f32 %v819, %v857
          %v864 = vadd.f32 %v820, %v853
          %v865 = vadd.f32 %v821, %v857
          %v866 = vadd.f32 %v822, %v853
          %v867 = vadd.f32 %v823, %v857
          %v868 = vadd.f32 %v824, %v853
          %v869 = vadd.f32 %v825, %v857
          %v870 = vadd.f32 %v826, %v853
          %v871 = vadd.f32 %v827, %v857
          %v872 = vadd.f32 %v828, %v853
          %v873 = vadd.f32 %v829, %v857
          %v874 = vadd.f32 %v830, %v853
          %v875 = vadd.f32 %v831, %v857
          %v876 = vadd.f32 %v832, %v853
          %v877 = vadd.f32 %v833, %v857
          %v878 = vadd.f32 %v834, %v853
          %v879 = vadd.f32 %v835, %v857
          %v880 = vadd.f32 %v836, %v853
          %v881 = vadd.f32 %v837, %v857
          %v882 = vadd.f32 %v838, %v853
          %v883 = vadd.f32 %v839, %v857
          %v884 = vadd.f32 %v840, %v853
          %v885 = vadd.f32 %v841, %v857
          %v886 = vadd.f32 %v842, %v853
          %v887 = vadd.f32 %v843, %v857
          %v888 = vadd.f32 %v844, %v853
          %v889 = vadd.f32 %v845, %v857
          %v890 = vadd.f32 %v846, %v853
          %v891 = vadd.f32 %v847, %v857
          %v892 = vmax.f32 %v860, 0.0
          %v893 = vmax.f32 %v861, 0.0
          %v894 = vmax.f32 %v862, 0.0
          %v895 = vmax.f32 %v863, 0.0
          %v896 = vmax.f32 %v864, 0.0
          %v897 = vmax.f32 %v865, 0.0
          %v898 = vmax.f32 %v866, 0.0
          %v899 = vmax.f32 %v867, 0.0
          %v900 = vmax.f32 %v868, 0.0
          %v901 = vmax.f32 %v869, 0.0
          %v902 = vmax.f32 %v870, 0.0
          %v903 = vmax.f32 %v871, 0.0
          %v904 = vmax.f32 %v872, 0.0
          %v905 = vmax.f32 %v873, 0.0
          %v906 = vmax.f32 %v874, 0.0
          %v907 = vmax.f32 %v875, 0.0
          %v908 = vmax.f32 %v876, 0.0
          %v909 = vmax.f32 %v877, 0.0
          %v910 = vmax.f32 %v878, 0.0
          %v911 = vmax.f32 %v879, 0.0
          %v912 = vmax.f32 %v880, 0.0
          %v913 = vmax.f32 %v881, 0.0
          %v914 = vmax.f32 %v882, 0.0
          %v915 = vmax.f32 %v883, 0.0
          %v916 = vmax.f32 %v884, 0.0
          %v917 = vmax.f32 %v885, 0.0
          %v918 = vmax.f32 %v886, 0.0
          %v919 = vmax.f32 %v887, 0.0
          %v920 = vmax.f32 %v888, 0.0
          %v921 = vmax.f32 %v889, 0.0
          %v922 = vmax.f32 %v890, 0.0
          %v923 = vmax.f32 %v891, 0.0
          %v924 = vpack.c.bf16 %v894, %v892
          %v925 = vpack.c.bf16 %v895, %v893
          %v926 = vpack.c.bf16 %v898, %v896
          %v927 = vpack.c.bf16 %v899, %v897
          %v928 = vpack.c.bf16 %v902, %v900
          %v929 = vpack.c.bf16 %v903, %v901
          %v930 = vpack.c.bf16 %v906, %v904
          %v931 = vpack.c.bf16 %v907, %v905
          %v932 = vpack.c.bf16 %v910, %v908
          %v933 = vpack.c.bf16 %v911, %v909
          %v934 = vpack.c.bf16 %v914, %v912
          %v935 = vpack.c.bf16 %v915, %v913
          %v936 = vpack.c.bf16 %v918, %v916
          %v937 = vpack.c.bf16 %v919, %v917
          %v938 = vpack.c.bf16 %v922, %v920
          %v939 = vpack.c.bf16 %v923, %v921
          %v940 = vld [vmem:[#allocation10] sm:$0xf]
          %v941 = vld [vmem:[#allocation10 + $0x4] sm:$0xf]
          %v942 = vld [vmem:[#allocation10 + $0x8] sm:$0xf]
          %v943 = vld [vmem:[#allocation10 + $0xc] sm:$0xf]
          %v944 = vld [vmem:[#allocation10 + $0x10] sm:$0xf]
          %v945 = vld [vmem:[#allocation10 + $0x14] sm:$0xf]
          %v946 = vld [vmem:[#allocation10 + $0x18] sm:$0xf]
          %v947 = vld [vmem:[#allocation10 + $0x1c] sm:$0xf]
          %v948 = vld [vmem:[#allocation10 + $0x20] sm:$0xf]
          %v949 = vld [vmem:[#allocation10 + $0x24] sm:$0xf]
          %v950 = vld [vmem:[#allocation10 + $0x28] sm:$0xf]
          %v951 = vld [vmem:[#allocation10 + $0x2c] sm:$0xf]
          %v952 = vld [vmem:[#allocation10 + $0x30] sm:$0xf]
          %v953 = vld [vmem:[#allocation10 + $0x34] sm:$0xf]
          %v954 = vld [vmem:[#allocation10 + $0x38] sm:$0xf]
          %v955 = vld [vmem:[#allocation10 + $0x3c] sm:$0xf]
          %v956 = vld [vmem:[#allocation10 + $0x40] sm:$0xf]
          %v957 = vld [vmem:[#allocation10 + $0x44] sm:$0xf]
          %v958 = vld [vmem:[#allocation10 + $0x48] sm:$0xf]
          %v959 = vld [vmem:[#allocation10 + $0x4c] sm:$0xf]
          %v960 = vld [vmem:[#allocation10 + $0x50] sm:$0xf]
          %v961 = vld [vmem:[#allocation10 + $0x54] sm:$0xf]
          %v962 = vld [vmem:[#allocation10 + $0x58] sm:$0xf]
          %v963 = vld [vmem:[#allocation10 + $0x5c] sm:$0xf]
          %v964 = vld [vmem:[#allocation10 + $0x60] sm:$0xf]
          %v965 = vld [vmem:[#allocation10 + $0x64] sm:$0xf]
          %v966 = vld [vmem:[#allocation10 + $0x68] sm:$0xf]
          %v967 = vld [vmem:[#allocation10 + $0x6c] sm:$0xf]
          %v968 = vld [vmem:[#allocation10 + $0x70] sm:$0xf]
          %v969 = vld [vmem:[#allocation10 + $0x74] sm:$0xf]
          %v970 = vld [vmem:[#allocation10 + $0x78] sm:$0xf]
          %v971 = vld [vmem:[#allocation10 + $0x7c] sm:$0xf]
          %v972 = vld [vmem:[%s5] sm:$0x1]
          %v974 = vlaneseq
          %v975 = vshrl.u32 %v974, 7
          %v976 = vsub.s32 0, %v975
          %v977 = vrot.slane %v972, %v976
          %v1011 = vunpack.c.l.b16 %v940
          %v1012 = vunpack.c.l.b16 %v941
          %v1013 = vunpack.c.l.b16 %v942
          %v1014 = vunpack.c.l.b16 %v943
          %v1015 = vunpack.c.l.b16 %v944
          %v1016 = vunpack.c.l.b16 %v945
          %v1017 = vunpack.c.l.b16 %v946
          %v1018 = vunpack.c.l.b16 %v947
          %v1019 = vunpack.c.l.b16 %v948
          %v1020 = vunpack.c.l.b16 %v949
          %v1021 = vunpack.c.l.b16 %v950
          %v1022 = vunpack.c.l.b16 %v951
          %v1023 = vunpack.c.l.b16 %v952
          %v1024 = vunpack.c.l.b16 %v953
          %v1025 = vunpack.c.l.b16 %v954
          %v1026 = vunpack.c.l.b16 %v955
          %v1027 = vunpack.c.l.b16 %v956
          %v1028 = vunpack.c.l.b16 %v957
          %v1029 = vunpack.c.l.b16 %v958
          %v1030 = vunpack.c.l.b16 %v959
          %v1031 = vunpack.c.l.b16 %v960
          %v1032 = vunpack.c.l.b16 %v961
          %v1033 = vunpack.c.l.b16 %v962
          %v1034 = vunpack.c.l.b16 %v963
          %v1035 = vunpack.c.l.b16 %v964
          %v1036 = vunpack.c.l.b16 %v965
          %v1037 = vunpack.c.l.b16 %v966
          %v1038 = vunpack.c.l.b16 %v967
          %v1039 = vunpack.c.l.b16 %v968
          %v1040 = vunpack.c.l.b16 %v969
          %v1041 = vunpack.c.l.b16 %v970
          %v1042 = vunpack.c.l.b16 %v971
          %v1043 = vpack.c.b16 %v1012, %v1011
          %v1044 = vpack.c.b16 %v1014, %v1013
          %v1045 = vpack.c.b16 %v1016, %v1015
          %v1046 = vpack.c.b16 %v1018, %v1017
          %v1047 = vpack.c.b16 %v1020, %v1019
          %v1048 = vpack.c.b16 %v1022, %v1021
          %v1049 = vpack.c.b16 %v1024, %v1023
          %v1050 = vpack.c.b16 %v1026, %v1025
          %v1051 = vpack.c.b16 %v1028, %v1027
          %v1052 = vpack.c.b16 %v1030, %v1029
          %v1053 = vpack.c.b16 %v1032, %v1031
          %v1054 = vpack.c.b16 %v1034, %v1033
          %v1055 = vpack.c.b16 %v1036, %v1035
          %v1056 = vpack.c.b16 %v1038, %v1037
          %v1057 = vpack.c.b16 %v1040, %v1039
          %v1058 = vpack.c.b16 %v1042, %v1041
          %1075 = vmatprep.subr.bf16.mxu0 0
          %1076 = vmatpush1.bf16.msra.mxu0 %v1050
          %1077 = vmatprep.subr.bf16.mxu0 0
          %1078 = vmatpush1.bf16.msra.mxu0 %v1049
          %1079 = vmatprep.subr.bf16.mxu0 0
          %1080 = vmatpush1.bf16.msra.mxu0 %v1048
          %1081 = vmatprep.subr.bf16.mxu0 0
          %1082 = vmatpush1.bf16.msra.mxu0 %v1047
          %1083 = vmatprep.subr.bf16.mxu0 0
          %1084 = vmatpush1.bf16.msra.mxu0 %v1046
          %1085 = vmatprep.subr.bf16.mxu0 0
          %1086 = vmatpush1.bf16.msra.mxu0 %v1045
          %1087 = vmatprep.subr.bf16.mxu0 0
          %1088 = vmatpush1.bf16.msra.mxu0 %v1044
          %1089 = vmatprep.subr.bf16.mxu0 0
          %1090 = vmatpush1.bf16.msra.mxu0 %v1043
          %1091 = vmatprep.subr.bf16.mxu0 0
          %1092 = vmatpush2.bf16.msra.mxu0 %v1058
          %1093 = vmatprep.subr.bf16.mxu0 0
          %1094 = vmatpush2.bf16.msra.mxu0 %v1057
          %1095 = vmatprep.subr.bf16.mxu0 0
          %1096 = vmatpush2.bf16.msra.mxu0 %v1056
          %1097 = vmatprep.subr.bf16.mxu0 0
          %1098 = vmatpush2.bf16.msra.mxu0 %v1055
          %1099 = vmatprep.subr.bf16.mxu0 0
          %1100 = vmatpush2.bf16.msra.mxu0 %v1054
          %1101 = vmatprep.subr.bf16.mxu0 0
          %1102 = vmatpush2.bf16.msra.mxu0 %v1053
          %1103 = vmatprep.subr.bf16.mxu0 0
          %1104 = vmatpush2.bf16.msra.mxu0 %v1052
          %1105 = vmatprep.subr.bf16.mxu0 0
          %1106 = vmatpush2.bf16.msra.mxu0 %v1051
          %1107 = vmatprep.mubr.bf16.mxu0 %v925
          %1108 = vmatmul.mubr.bf16.gmra.mxu0 %v924
          %v1109 = vpop.f32.mrf.mxu0
          %v1110 = vadd.f32 %v977, %v1109
          %v1111 = vpop.f32.mrf.mxu0
          %v1112 = vpop.f32.mrf.mxu0
          %v1113 = vadd.f32 %v977, %v1112
          %v1114 = vpop.f32.mrf.mxu0
          %1115 = vmatprep.mubr.bf16.mxu0 %v927
          %1116 = vmatmul.mubr.bf16.gmra.mxu0 %v926
          %v1117 = vpop.f32.mrf.mxu0
          %v1118 = vadd.f32 %v977, %v1117
          %v1119 = vpop.f32.mrf.mxu0
          %v1120 = vpop.f32.mrf.mxu0
          %v1121 = vadd.f32 %v977, %v1120
          %v1122 = vpop.f32.mrf.mxu0
          %1123 = vmatprep.mubr.bf16.mxu0 %v929
          %1124 = vmatmul.mubr.bf16.gmra.mxu0 %v928
          %v1125 = vpop.f32.mrf.mxu0
          %v1126 = vadd.f32 %v977, %v1125
          %v1127 = vpop.f32.mrf.mxu0
          %v1128 = vpop.f32.mrf.mxu0
          %v1129 = vadd.f32 %v977, %v1128
          %v1130 = vpop.f32.mrf.mxu0
          %1131 = vmatprep.mubr.bf16.mxu0 %v931
          %1132 = vmatmul.mubr.bf16.gmra.mxu0 %v930
          %v1133 = vpop.f32.mrf.mxu0
          %v1134 = vadd.f32 %v977, %v1133
          %v1135 = vpop.f32.mrf.mxu0
          %v1136 = vpop.f32.mrf.mxu0
          %v1137 = vadd.f32 %v977, %v1136
          %v1138 = vpop.f32.mrf.mxu0
          %1139 = vmatprep.mubr.bf16.mxu0 %v933
          %1140 = vmatmul.mubr.bf16.gmra.mxu0 %v932
          %v1141 = vpop.f32.mrf.mxu0
          %v1142 = vadd.f32 %v977, %v1141
          %v1143 = vpop.f32.mrf.mxu0
          %v1144 = vpop.f32.mrf.mxu0
          %v1145 = vadd.f32 %v977, %v1144
          %v1146 = vpop.f32.mrf.mxu0
          %1147 = vmatprep.mubr.bf16.mxu0 %v935
          %1148 = vmatmul.mubr.bf16.gmra.mxu0 %v934
          %v1149 = vpop.f32.mrf.mxu0
          %v1150 = vadd.f32 %v977, %v1149
          %v1151 = vpop.f32.mrf.mxu0
          %v1152 = vpop.f32.mrf.mxu0
          %v1153 = vadd.f32 %v977, %v1152
          %v1154 = vpop.f32.mrf.mxu0
          %1155 = vmatprep.mubr.bf16.mxu0 %v937
          %1156 = vmatmul.mubr.bf16.gmra.mxu0 %v936
          %v1157 = vpop.f32.mrf.mxu0
          %v1158 = vadd.f32 %v977, %v1157
          %v1159 = vpop.f32.mrf.mxu0
          %v1160 = vpop.f32.mrf.mxu0
          %v1161 = vadd.f32 %v977, %v1160
          %v1162 = vpop.f32.mrf.mxu0
          %1163 = vmatprep.mubr.bf16.mxu0 %v939
          %1164 = vmatmul.mubr.bf16.gmra.mxu0 %v938
          %v1165 = vpop.f32.mrf.mxu0
          %v1166 = vadd.f32 %v977, %v1165
          %v1167 = vpop.f32.mrf.mxu0
          %v1168 = vpop.f32.mrf.mxu0
          %v1169 = vadd.f32 %v977, %v1168
          %v1170 = vpop.f32.mrf.mxu0
          %1171 = vdwg.mxu0
          %1172 = vst [vmem:[%s287] sm:$0xff] %v1110
          %1173 = vst [vmem:[%s287 + $0x8] sm:$0xff] %v1113
          %1174 = vst [vmem:[%s287 + $0x10] sm:$0xff] %v1118
          %1175 = vst [vmem:[%s287 + $0x18] sm:$0xff] %v1121
          %1176 = vst [vmem:[%s287 + $0x20] sm:$0xff] %v1126
          %1177 = vst [vmem:[%s287 + $0x28] sm:$0xff] %v1129
          %1178 = vst [vmem:[%s287 + $0x30] sm:$0xff] %v1134
          %1179 = vst [vmem:[%s287 + $0x38] sm:$0xff] %v1137
          %1180 = vst [vmem:[%s287 + $0x40] sm:$0xff] %v1142
          %1181 = vst [vmem:[%s287 + $0x48] sm:$0xff] %v1145
          %1182 = vst [vmem:[%s287 + $0x50] sm:$0xff] %v1150
          %1183 = vst [vmem:[%s287 + $0x58] sm:$0xff] %v1153
          %1184 = vst [vmem:[%s287 + $0x60] sm:$0xff] %v1158
          %1185 = vst [vmem:[%s287 + $0x68] sm:$0xff] %v1161
          %1186 = vst [vmem:[%s287 + $0x70] sm:$0xff] %v1166
          %1187 = vst [vmem:[%s287 + $0x78] sm:$0xff] %v1169
        $region68: #{tpu_custom_call.1} parent=43 // pred_fallthru
          _
        %s1188 = sand.u32 %s170, 1
        %s1189 = scalar_lea.sflag [#allocation7], %s1188
        %s1190 = sand.u32 %s170, 1
        %s1191 = smul.addr %s1190, 128
        %s1192 = scalar_lea.vmem [#allocation11], %s1191
        // Predicated region
        $region73: #{tpu_custom_call.1} parent=43 // pred_check
          %p1193 = pneg %p180
        $region74: #{tpu_custom_call.1} parent=43 // pred_check_branch
          %1195 = sbr.rel (%p1193) target = $region76
        $region75: #{tpu_custom_call.1} parent=43 // pred_region
          %s1196 = smul.u32 %s26, %s27
          %s1197 = smul.u32 16, %s1196
          %s1199 = ssub.s32 2048, 2048
          %1200 = vsyncadd %s1189, %s1199
          %s1201 = smul.addr %s1197, 128
          %s1202 = scalar_lea.hbm %s6, %s1201
          %s1203 = sshll.u32 %s1192, 4
          %s1204 = int_to_ptr.vmem [resolvable:$true] %s1203
          %1209 = dma.vmem_to_hbm [thread:$0]  %s1204, 2048, %s1202, %s1189, 128, 128, 8
        $region76: #{tpu_custom_call.1} parent=43 // pred_fallthru
          _
      $region44: #{tpu_custom_call.1} parent=5 // pred_fallthru
        _
      %p1210 = scmp.le.s32.totalorder 2, %s17
      // Predicated region
      $region77: #{tpu_custom_call.1} parent=5 // pred_check
        %p1211 = pneg %p1210
      $region78: #{tpu_custom_call.1} parent=5 // pred_check_branch
        %1213 = sbr.rel (%p1211) target = $region80
      $region79: #{tpu_custom_call.1} parent=5 // pred_region
        %s1214 = ssub.s32 %s17, 2
        // Predicated region
        $region81: #{tpu_custom_call.1} parent=79 // pred_check
          %p1215 = pneg %p186
        $region82: #{tpu_custom_call.1} parent=79 // pred_check_branch
          %1217 = sbr.rel (%p1215) target = $region84
        $region83: #{tpu_custom_call.1} parent=79 // pred_region
          %s1218 = sand.u32 %s171, 1
          %s1219 = scalar_lea.sflag [#allocation7], %s1218
          %s1220 = sand.u32 %s171, 1
          %s1221 = smul.addr %s1220, 128
          %s1222 = scalar_lea.vmem [#allocation11], %s1221
          %1223 = dma.done %s1219, 2048
        $region84: #{tpu_custom_call.1} parent=79 // pred_fallthru
          _
      $region80: #{tpu_custom_call.1} parent=5 // pred_fallthru
        _
    $region6: #{tpu_custom_call.1} parent=1 // loop_footer
      %s21 = sadd.s32 1, %s17
    $region7: #{tpu_custom_call.1} parent=1 // loop_footer_branch
      %16 = sbr.rel target = $region3
    $region8: #{tpu_custom_call.1} parent=1 // loop_exit
      _
    %1224 = vsyncpa [#allocation6], 1
    %s1225 = scalar_lea.sflag [#allocation6], 1
    %1226 = vsyncpa %s1225, 1
    %1227 = vsyncpa [#allocation9], 1
    %1228 = vsyncpa [#allocation7], 1
    %s1229 = scalar_lea.sflag [#allocation7], 1
    %1230 = vsyncpa %s1229, 1

// kernel: tpu_custom_call.1
$region0: #{tpu_custom_call.1}
  #allocation0 [shape = 'u32[]', space=smem, size = 0x4, offset = 0x4, fixed_abs, tag = 'smem constant byte address 0x4 - core index']
  #allocation1 [shape = 'u32[144,128]{1,0:T(1,128)}', space=vmem, size = 0x12000, scoped, tag = 'internal scratch']
  #allocation2 [shape = 'f32[256,256]{1,0:T(8,128)}', space=vmem, size = 0x40000, scoped, tag = 'scratch operand']
  #allocation3 [shape = 'f32[1,256]{1,0:T(1,128)}', space=vmem, size = 0x400, scoped, tag = 'scratch operand']
  #allocation4 [shape = 'f32[1,256]{1,0:T(1,128)}', space=vmem, size = 0x400, scoped, tag = 'scratch operand']
  %s0 = inlined_call_operand.hbm [shape: f32[256,128], index: 0, kind: input, shape index: {}]
  %s1 = inlined_call_operand.hbm [shape: bf16[128,256], index: 1, kind: input, shape index: {}]
  %s2 = inlined_call_operand.vmem [shape: f32[1,256], index: 2, kind: input, shape index: {}]
  %s3 = inlined_call_operand.vmem [shape: f32[1,256], index: 3, kind: input, shape index: {}]
  %s4 = inlined_call_operand.hbm [shape: bf16[256,128], index: 4, kind: input, shape index: {}]
  %s5 = inlined_call_operand.vmem [shape: f32[1,128], index: 5, kind: input, shape index: {}]
  %s6 = inlined_call_operand.hbm [shape: f32[256,128], index: 6, kind: output, shape index: {}]
  %s7 = sld [smem:[#allocation0]]
  $region85: #{tpu_custom_call.1} parent=0
    _
  %s9 = ssub.s32 1, %s7
  %s10 = scalar_select 0, %s9, %s7
  $region1: #{tpu_custom_call.1} parent=0
    #allocation5 [shape = 'u8[131072]{0}', space=vmem, size = 0x20000, scoped, tag = 'input window, operand 0, single buffered']
    #allocation6 [shape = 's32[2]{0}', space=sflag, size = 0x8, scoped, tag = 'scoped memory for tpu_custom_call.1']
    #allocation7 [shape = 's32[2]{0}', space=sflag, size = 0x8, scoped, tag = 'scoped memory for tpu_custom_call.1']
    #allocation8 [shape = 'u8[65536]{0}', space=vmem, size = 0x10000, scoped, tag = 'input window, operand 1, single buffered']
    #allocation9 [shape = 's32[1]{0}', space=sflag, size = 0x4, scoped, tag = 'scoped memory for tpu_custom_call.1']
    #allocation10 [shape = 'u8[65536]{0}', space=vmem, size = 0x10000, scoped, tag = 'input window, operand 4, single buffered']
    #allocation11 [shape = 'u8[131072]{0}', space=vmem, size = 0x20000, scoped, tag = 'output window, operand 0']
    %11 = vsyncpa [#allocation6], 0
    %12 = vsyncpa [#allocation9], 0
    %13 = vsyncpa [#allocation7], 0
    %s14 = scalar_lea.sflag [#allocation7], 1
    %15 = vsyncpa %s14, 0
    loop: start=0, step=1, limit=6
    $region2: #{tpu_custom_call.1} parent=1 // loop_pre_header
      _
    $region3: #{tpu_custom_call.1} parent=1 // loop_header
      %s17 = sphi 0, %s21
      %p18 = scmp.ge.s32.totalorder %s17, 6
      %s24 = sphi 0, %s36
      %s25 = sphi 0, %s32
      %s26 = sphi 0, %s24
      %s27 = sphi 0, %s25
      %s28 = sphi 0, %s26
      %s29 = sphi 0, %s27
      %s37 = sphi 0, %s37
      %s39 = sphi 0, %s37
      %s40 = sphi 0, %s39
      %s54 = sphi 0, %s40
      %s58 = sphi 0, %s58
      %s60 = sphi 0, %s58
      %s61 = sphi 0, %s60
      %s75 = sphi 0, %s61
      %s79 = sphi 0, %s79
      %s81 = sphi 0, %s79
      %s82 = sphi 0, %s81
      %s96 = sphi 0, %s82
      %s100 = sphi 0, %s100
      %s102 = sphi 0, %s100
      %s103 = sphi 0, %s102
      %s117 = sphi 0, %s103
      %s121 = sphi 0, %s121
      %s123 = sphi 0, %s121
      %s124 = sphi 0, %s123
      %s138 = sphi 0, %s124
      %s142 = sphi 0, %s142
      %s144 = sphi 0, %s142
      %s145 = sphi 0, %s144
      %s159 = sphi 0, %s145
      %s167 = sphi 0, %s169
      %s170 = sphi 0, %s167
      %s171 = sphi 0, %s170
      %s187 = sphi 0, %s171
    $region4: #{tpu_custom_call.1} parent=1 // loop_header_branch
      %20 = sbr.rel (%p18) target = $region8
    $region5: #{tpu_custom_call.1} parent=1 // loop_body
      %s22 = ssub.s32 %s17, 1
      %s23 = ssub.s32 %s17, 2
      %s30 = sadd.s32 1, %s25
      %p31 = scmp.ge.s32.totalorder %s30, 2
      %s32 = scalar_select %p31, 0, %s30
      %s33 = sadd.s32 1, %s24
      %s34 = scalar_select %p31, %s33, %s24
      %p35 = scmp.ge.s32.totalorder %s34, 2
      %s36 = scalar_select %p35, 0, %s34
      %s38 = sadd.s32 %s37, 1
      %p41 = scmp.eq.s32.totalorder %s17, 3
      %p42 = scmp.ne.s32.totalorder %s37, %s39
      %p43 = scmp.eq.s32.totalorder %s17, 0
      %p44 = por %p42, %p43
      %p45 = scmp.ne.s32.totalorder %s37, %s39
      %p46 = scmp.eq.s32.totalorder %s22, 3
      %p47 = por %p45, %p46
      %p48 = scmp.ne.s32.totalorder %s39, %s40
      %p49 = scmp.eq.s32.totalorder %s22, 0
      %p50 = por %p48, %p49
      %p51 = scmp.ne.s32.totalorder %s39, %s40
      %p52 = scmp.eq.s32.totalorder %s23, 3
      %p53 = por %p51, %p52
      %p55 = scmp.ne.s32.totalorder %s40, %s54
      %p56 = scmp.eq.s32.totalorder %s23, 0
      %p57 = por %p55, %p56
      %s59 = sadd.s32 %s58, 1
      %p62 = scmp.eq.s32.totalorder %s17, 3
      %p63 = scmp.ne.s32.totalorder %s58, %s60
      %p64 = scmp.eq.s32.totalorder %s17, 0
      %p65 = por %p63, %p64
      %p66 = scmp.ne.s32.totalorder %s58, %s60
      %p67 = scmp.eq.s32.totalorder %s22, 3
      %p68 = por %p66, %p67
      %p69 = scmp.ne.s32.totalorder %s60, %s61
      %p70 = scmp.eq.s32.totalorder %s22, 0
      %p71 = por %p69, %p70
      %p72 = scmp.ne.s32.totalorder %s60, %s61
      %p73 = scmp.eq.s32.totalorder %s23, 3
      %p74 = por %p72, %p73
      %p76 = scmp.ne.s32.totalorder %s61, %s75
      %p77 = scmp.eq.s32.totalorder %s23, 0
      %p78 = por %p76, %p77
      %s80 = sadd.s32 %s79, 1
      %p83 = scmp.eq.s32.totalorder %s17, 3
      %p84 = scmp.ne.s32.totalorder %s79, %s81
      %p85 = scmp.eq.s32.totalorder %s17, 0
      %p86 = por %p84, %p85
      %p87 = scmp.ne.s32.totalorder %s79, %s81
      %p88 = scmp.eq.s32.totalorder %s22, 3
      %p89 = por %p87, %p88
      %p90 = scmp.ne.s32.totalorder %s81, %s82
      %p91 = scmp.eq.s32.totalorder %s22, 0
      %p92 = por %p90, %p91
      %p93 = scmp.ne.s32.totalorder %s81, %s82
      %p94 = scmp.eq.s32.totalorder %s23, 3
      %p95 = por %p93, %p94
      %p97 = scmp.ne.s32.totalorder %s82, %s96
      %p98 = scmp.eq.s32.totalorder %s23, 0
      %p99 = por %p97, %p98
      %s101 = sadd.s32 %s100, 1
      %p104 = scmp.eq.s32.totalorder %s17, 3
      %p105 = scmp.ne.s32.totalorder %s100, %s102
      %p106 = scmp.eq.s32.totalorder %s17, 0
      %p107 = por %p105, %p106
      %p108 = scmp.ne.s32.totalorder %s100, %s102
      %p109 = scmp.eq.s32.totalorder %s22, 3
      %p110 = por %p108, %p109
      %p111 = scmp.ne.s32.totalorder %s102, %s103
      %p112 = scmp.eq.s32.totalorder %s22, 0
      %p113 = por %p111, %p112
      %p114 = scmp.ne.s32.totalorder %s102, %s103
      %p115 = scmp.eq.s32.totalorder %s23, 3
      %p116 = por %p114, %p115
      %p118 = scmp.ne.s32.totalorder %s103, %s117
      %p119 = scmp.eq.s32.totalorder %s23, 0
      %p120 = por %p118, %p119
      %s122 = sadd.s32 %s121, 1
      %p125 = scmp.eq.s32.totalorder %s17, 3
      %p126 = scmp.ne.s32.totalorder %s121, %s123
      %p127 = scmp.eq.s32.totalorder %s17, 0
      %p128 = por %p126, %p127
      %p129 = scmp.ne.s32.totalorder %s121, %s123
      %p130 = scmp.eq.s32.totalorder %s22, 3
      %p131 = por %p129, %p130
      %p132 = scmp.ne.s32.totalorder %s123, %s124
      %p133 = scmp.eq.s32.totalorder %s22, 0
      %p134 = por %p132, %p133
      %p135 = scmp.ne.s32.totalorder %s123, %s124
      %p136 = scmp.eq.s32.totalorder %s23, 3
      %p137 = por %p135, %p136
      %p139 = scmp.ne.s32.totalorder %s124, %s138
      %p140 = scmp.eq.s32.totalorder %s23, 0
      %p141 = por %p139, %p140
      %s143 = sadd.s32 %s142, 1
      %p146 = scmp.eq.s32.totalorder %s17, 3
      %p147 = scmp.ne.s32.totalorder %s142, %s144
      %p148 = scmp.eq.s32.totalorder %s17, 0
      %p149 = por %p147, %p148
      %p150 = scmp.ne.s32.totalorder %s142, %s144
      %p151 = scmp.eq.s32.totalorder %s22, 3
      %p152 = por %p150, %p151
      %p153 = scmp.ne.s32.totalorder %s144, %s145
      %p154 = scmp.eq.s32.totalorder %s22, 0
      %p155 = por %p153, %p154
      %p156 = scmp.ne.s32.totalorder %s144, %s145
      %p157 = scmp.eq.s32.totalorder %s23, 3
      %p158 = por %p156, %p157
      %p160 = scmp.ne.s32.totalorder %s145, %s159
      %p161 = scmp.eq.s32.totalorder %s23, 0
      %p162 = por %p160, %p161
      %s163 = smul.u32 %s24, %s25
      %s164 = smul.u32 %s36, %s32
      %s165 = ssub.s32 %s163, %s164
      %p166 = scmp.eq.s32.totalorder %s165, 0
      %s168 = sadd.s32 %s167, 1
      %s169 = scalar_select %p166, %s167, %s168
      %p172 = pneg %p166
      %p173 = scmp.eq.s32.totalorder %s17, 3
      %p174 = por %p172, %p173
      %p175 = scmp.ne.s32.totalorder %s167, %s170
      %p176 = scmp.eq.s32.totalorder %s17, 0
      %p177 = por %p175, %p176
      %p178 = scmp.ne.s32.totalorder %s167, %s170
      %p179 = scmp.eq.s32.totalorder %s22, 3
      %p180 = por %p178, %p179
      %p181 = scmp.ne.s32.totalorder %s170, %s171
      %p182 = scmp.eq.s32.totalorder %s22, 0
      %p183 = por %p181, %p182
      %p184 = scmp.ne.s32.totalorder %s170, %s171
      %p185 = scmp.eq.s32.totalorder %s23, 3
      %p186 = por %p184, %p185
      %p188 = scmp.ne.s32.totalorder %s171, %s187
      %p189 = scmp.eq.s32.totalorder %s23, 0
      %p190 = por %p188, %p189
      %p191 = scmp.le.s32.totalorder 1, %s17
      %p192 = scmp.lt.s32.totalorder %s17, 5
      %p193 = pnand %p191, %p192
      %p194 = pneg %p193
      // Predicated region
      $region9: #{tpu_custom_call.1} parent=5 // pred_check
        _
      $region10: #{tpu_custom_call.1} parent=5 // pred_check_branch
        %196 = sbr.rel (%p193) target = $region12
      $region11: #{tpu_custom_call.1} parent=5 // pred_region
        %s197 = ssub.s32 %s17, 1
        // Predicated region
        $region13: #{tpu_custom_call.1} parent=11 // pred_check
          %p198 = pneg %p50
        $region14: #{tpu_custom_call.1} parent=11 // pred_check_branch
          %200 = sbr.rel (%p198) target = $region16
        $region15: #{tpu_custom_call.1} parent=11 // pred_region
          %s202 = ssub.s32 4096, 4096
          %203 = vsyncadd [#allocation6], %s202
          %s204 = sshll.u32 [#allocation5], 4
          %s205 = int_to_ptr.vmem [resolvable:$true] %s204
          %210 = dma.hbm_to_vmem [thread:$0]  %s0, 4096, %s205, [#allocation6], 128, 128, 8
        $region16: #{tpu_custom_call.1} parent=11 // pred_fallthru
          _
        // Predicated region
        $region17: #{tpu_custom_call.1} parent=11 // pred_check
          %p211 = pneg %p71
        $region18: #{tpu_custom_call.1} parent=11 // pred_check_branch
          %213 = sbr.rel (%p211) target = $region20
        $region19: #{tpu_custom_call.1} parent=11 // pred_region
          %s215 = ssub.s32 2048, 2048
          %216 = vsyncadd [#allocation9], %s215
          %s217 = sshll.u32 [#allocation8], 4
          %s218 = int_to_ptr.vmem [resolvable:$true] %s217
          %223 = dma.hbm_to_vmem [thread:$0]  %s1, 2048, %s218, [#allocation9], 128, 128, 8
        $region20: #{tpu_custom_call.1} parent=11 // pred_fallthru
          _
        // Predicated region
        $region21: #{tpu_custom_call.1} parent=11 // pred_check
          %p224 = pneg %p92
        $region22: #{tpu_custom_call.1} parent=11 // pred_check_branch
          %226 = sbr.rel (%p224) target = $region24
        $region23: #{tpu_custom_call.1} parent=11 // pred_region
          _
        $region24: #{tpu_custom_call.1} parent=11 // pred_fallthru
          _
        // Predicated region
        $region25: #{tpu_custom_call.1} parent=11 // pred_check
          %p227 = pneg %p113
        $region26: #{tpu_custom_call.1} parent=11 // pred_check_branch
          %229 = sbr.rel (%p227) target = $region28
        $region27: #{tpu_custom_call.1} parent=11 // pred_region
          _
        $region28: #{tpu_custom_call.1} parent=11 // pred_fallthru
          _
        // Predicated region
        $region29: #{tpu_custom_call.1} parent=11 // pred_check
          %p230 = pneg %p134
        $region30: #{tpu_custom_call.1} parent=11 // pred_check_branch
          %232 = sbr.rel (%p230) target = $region32
        $region31: #{tpu_custom_call.1} parent=11 // pred_region
          %s234 = ssub.s32 2048, 2048
          %235 = vsyncadd [#allocation9], %s234
          %s236 = sshll.u32 [#allocation10], 4
          %s237 = int_to_ptr.vmem [resolvable:$true] %s236
          %242 = dma.hbm_to_vmem [thread:$0]  %s4, 2048, %s237, [#allocation9], 64, 64, 4
        $region32: #{tpu_custom_call.1} parent=11 // pred_fallthru
          _
        // Predicated region
        $region33: #{tpu_custom_call.1} parent=11 // pred_check
          %p243 = pneg %p155
        $region34: #{tpu_custom_call.1} parent=11 // pred_check_branch
          %245 = sbr.rel (%p243) target = $region36
        $region35: #{tpu_custom_call.1} parent=11 // pred_region
          _
        $region36: #{tpu_custom_call.1} parent=11 // pred_fallthru
          _
      $region12: #{tpu_custom_call.1} parent=5 // pred_fallthru
        _
      %p246 = scmp.lt.s32.totalorder %s17, 4
      // Predicated region
      $region37: #{tpu_custom_call.1} parent=5 // pred_check
        %p247 = pneg %p246
      $region38: #{tpu_custom_call.1} parent=5 // pred_check_branch
        %249 = sbr.rel (%p247) target = $region40
      $region39: #{tpu_custom_call.1} parent=5 // pred_region
        _
      $region40: #{tpu_custom_call.1} parent=5 // pred_fallthru
        _
      %p250 = scmp.le.s32.totalorder 1, %s17
      %p251 = scmp.lt.s32.totalorder %s17, 5
      %p252 = pnand %p250, %p251
      %p253 = pneg %p252
      // Predicated region
      $region41: #{tpu_custom_call.1} parent=5 // pred_check
        _
      $region42: #{tpu_custom_call.1} parent=5 // pred_check_branch
        %255 = sbr.rel (%p252) target = $region44
      $region43: #{tpu_custom_call.1} parent=5 // pred_region
        %s256 = ssub.s32 %s17, 1
        // Predicated region
        $region45: #{tpu_custom_call.1} parent=43 // pred_check
          %p257 = pneg %p50
        $region46: #{tpu_custom_call.1} parent=43 // pred_check_branch
          %259 = sbr.rel (%p257) target = $region48
        $region47: #{tpu_custom_call.1} parent=43 // pred_region
          %260 = dma.done [#allocation6], 4096
        $region48: #{tpu_custom_call.1} parent=43 // pred_fallthru
          _
        // Predicated region
        $region49: #{tpu_custom_call.1} parent=43 // pred_check
          %p261 = pneg %p71
        $region50: #{tpu_custom_call.1} parent=43 // pred_check_branch
          %263 = sbr.rel (%p261) target = $region52
        $region51: #{tpu_custom_call.1} parent=43 // pred_region
          %264 = dma.done [#allocation9], 2048
        $region52: #{tpu_custom_call.1} parent=43 // pred_fallthru
          _
        // Predicated region
        $region53: #{tpu_custom_call.1} parent=43 // pred_check
          %p265 = pneg %p134
        $region54: #{tpu_custom_call.1} parent=43 // pred_check_branch
          %267 = sbr.rel (%p265) target = $region56
        $region55: #{tpu_custom_call.1} parent=43 // pred_region
          %268 = dma.done [#allocation9], 2048
        $region56: #{tpu_custom_call.1} parent=43 // pred_fallthru
          _
        %p269 = pneg %p50
        %p270 = pneg %p47
        %p271 = pneg %p71
        %p272 = pneg %p68
        %p273 = pneg %p92
        %p274 = pneg %p89
        %p275 = pneg %p113
        %p276 = pneg %p110
        %p277 = pneg %p134
        %p278 = pneg %p131
        %p279 = pneg %p155
        %p280 = pneg %p152
        %p281 = pneg %p183
        %p282 = pneg %p180
        %s283 = sand.u32 %s170, 1
        %s284 = scalar_lea.sflag [#allocation7], %s283
        %s285 = sand.u32 %s170, 1
        %s286 = smul.addr %s285, 128
        %s287 = scalar_lea.vmem [#allocation11], %s286
        %s288 = smul.u32 %s26, %s27
        %s289 = smul.u32 16, %s288
        %s291 = smul.u32 %s27, 128
        %p292 = scmp.eq.s32.totalorder %s26, 0
        // Predicated region
        $region57: #{tpu_custom_call.1} parent=43 // pred_check
          %p293 = pneg %p292
        $region58: #{tpu_custom_call.1} parent=43 // pred_check_branch
          %295 = sbr.rel (%p293) target = $region60
        $region59: #{tpu_custom_call.1} parent=43 // pred_region
          %s296 = scalar_lea.vmem [#allocation5], %s291
          %v297 = vld [vmem:[%s296] sm:$0xff]
          %v298 = vld [vmem:[%s296 + $0x8] sm:$0xff]
          %v299 = vld [vmem:[%s296 + $0x10] sm:$0xff]
          %v300 = vld [vmem:[%s296 + $0x18] sm:$0xff]
          %v301 = vld [vmem:[%s296 + $0x20] sm:$0xff]
          %v302 = vld [vmem:[%s296 + $0x28] sm:$0xff]
          %v303 = vld [vmem:[%s296 + $0x30] sm:$0xff]
          %v304 = vld [vmem:[%s296 + $0x38] sm:$0xff]
          %v305 = vld [vmem:[%s296 + $0x40] sm:$0xff]
          %v306 = vld [vmem:[%s296 + $0x48] sm:$0xff]
          %v307 = vld [vmem:[%s296 + $0x50] sm:$0xff]
          %v308 = vld [vmem:[%s296 + $0x58] sm:$0xff]
          %v309 = vld [vmem:[%s296 + $0x60] sm:$0xff]
          %v310 = vld [vmem:[%s296 + $0x68] sm:$0xff]
          %v311 = vld [vmem:[%s296 + $0x70] sm:$0xff]
          %v312 = vld [vmem:[%s296 + $0x78] sm:$0xff]
          %v313 = vpack.c.bf16 %v298, %v297
          %v314 = vpack.c.bf16 %v300, %v299
          %v315 = vpack.c.bf16 %v302, %v301
          %v316 = vpack.c.bf16 %v304, %v303
          %v317 = vpack.c.bf16 %v306, %v305
          %v318 = vpack.c.bf16 %v308, %v307
          %v319 = vpack.c.bf16 %v310, %v309
          %v320 = vpack.c.bf16 %v312, %v311
          %v321 = vld [vmem:[#allocation8] sm:$0xff]
          %v322 = vld [vmem:[#allocation8 + $0x8] sm:$0xff]
          %v323 = vld [vmem:[#allocation8 + $0x10] sm:$0xff]
          %v324 = vld [vmem:[#allocation8 + $0x18] sm:$0xff]
          %v325 = vld [vmem:[#allocation8 + $0x20] sm:$0xff]
          %v326 = vld [vmem:[#allocation8 + $0x28] sm:$0xff]
          %v327 = vld [vmem:[#allocation8 + $0x30] sm:$0xff]
          %v328 = vld [vmem:[#allocation8 + $0x38] sm:$0xff]
          %v329 = vld [vmem:[#allocation8 + $0x40] sm:$0xff]
          %v330 = vld [vmem:[#allocation8 + $0x48] sm:$0xff]
          %v331 = vld [vmem:[#allocation8 + $0x50] sm:$0xff]
          %v332 = vld [vmem:[#allocation8 + $0x58] sm:$0xff]
          %v333 = vld [vmem:[#allocation8 + $0x60] sm:$0xff]
          %v334 = vld [vmem:[#allocation8 + $0x68] sm:$0xff]
          %v335 = vld [vmem:[#allocation8 + $0x70] sm:$0xff]
          %v336 = vld [vmem:[#allocation8 + $0x78] sm:$0xff]
          %v353 = vunpack.c.l.b16 %v321
          %v354 = vunpack.c.h.b16 %v321
          %v355 = vunpack.c.l.b16 %v322
          %v356 = vunpack.c.h.b16 %v322
          %v357 = vunpack.c.l.b16 %v323
          %v358 = vunpack.c.h.b16 %v323
          %v359 = vunpack.c.l.b16 %v324
          %v360 = vunpack.c.h.b16 %v324
          %v361 = vunpack.c.l.b16 %v325
          %v362 = vunpack.c.h.b16 %v325
          %v363 = vunpack.c.l.b16 %v326
          %v364 = vunpack.c.h.b16 %v326
          %v365 = vunpack.c.l.b16 %v327
          %v366 = vunpack.c.h.b16 %v327
          %v367 = vunpack.c.l.b16 %v328
          %v368 = vunpack.c.h.b16 %v328
          %v369 = vunpack.c.l.b16 %v329
          %v370 = vunpack.c.h.b16 %v329
          %v371 = vunpack.c.l.b16 %v330
          %v372 = vunpack.c.h.b16 %v330
          %v373 = vunpack.c.l.b16 %v331
          %v374 = vunpack.c.h.b16 %v331
          %v375 = vunpack.c.l.b16 %v332
          %v376 = vunpack.c.h.b16 %v332
          %v377 = vunpack.c.l.b16 %v333
          %v378 = vunpack.c.h.b16 %v333
          %v379 = vunpack.c.l.b16 %v334
          %v380 = vunpack.c.h.b16 %v334
          %v381 = vunpack.c.l.b16 %v335
          %v382 = vunpack.c.h.b16 %v335
          %v383 = vunpack.c.l.b16 %v336
          %v384 = vunpack.c.h.b16 %v336
          %v385 = vpack.c.b16 %v355, %v353
          %v386 = vpack.c.b16 %v356, %v354
          %v387 = vpack.c.b16 %v359, %v357
          %v388 = vpack.c.b16 %v360, %v358
          %v389 = vpack.c.b16 %v363, %v361
          %v390 = vpack.c.b16 %v364, %v362
          %v391 = vpack.c.b16 %v367, %v365
          %v392 = vpack.c.b16 %v368, %v366
          %v393 = vpack.c.b16 %v371, %v369
          %v394 = vpack.c.b16 %v372, %v370
          %v395 = vpack.c.b16 %v375, %v373
          %v396 = vpack.c.b16 %v376, %v374
          %v397 = vpack.c.b16 %v379, %v377
          %v398 = vpack.c.b16 %v380, %v378
          %v399 = vpack.c.b16 %v383, %v381
          %v400 = vpack.c.b16 %v384, %v382
          %417 = vmatprep.subr.bf16.mxu0 %v400
          %418 = vmatpush1.bf16.msra.mxu0 %v399
          %419 = vmatprep.subr.bf16.mxu0 %v398
          %420 = vmatpush1.bf16.msra.mxu0 %v397
          %421 = vmatprep.subr.bf16.mxu0 %v396
          %422 = vmatpush1.bf16.msra.mxu0 %v395
          %423 = vmatprep.subr.bf16.mxu0 %v394
          %424 = vmatpush1.bf16.msra.mxu0 %v393
          %425 = vmatprep.subr.bf16.mxu0 %v392
          %426 = vmatpush1.bf16.msra.mxu0 %v391
          %427 = vmatprep.subr.bf16.mxu0 %v390
          %428 = vmatpush1.bf16.msra.mxu0 %v389
          %429 = vmatprep.subr.bf16.mxu0 %v388
          %430 = vmatpush1.bf16.msra.mxu0 %v387
          %431 = vmatprep.subr.bf16.mxu0 %v386
          %432 = vmatpush1.bf16.msra.mxu0 %v385
          %433 = vmatprep.subr.bf16.mxu0 0
          %434 = vmatpush2.bf16.msra.mxu0 0
          %435 = vmatprep.subr.bf16.mxu0 0
          %436 = vmatpush2.bf16.msra.mxu0 0
          %437 = vmatprep.subr.bf16.mxu0 0
          %438 = vmatpush2.bf16.msra.mxu0 0
          %439 = vmatprep.subr.bf16.mxu0 0
          %440 = vmatpush2.bf16.msra.mxu0 0
          %441 = vmatprep.subr.bf16.mxu0 0
          %442 = vmatpush2.bf16.msra.mxu0 0
          %443 = vmatprep.subr.bf16.mxu0 0
          %444 = vmatpush2.bf16.msra.mxu0 0
          %445 = vmatprep.subr.bf16.mxu0 0
          %446 = vmatpush2.bf16.msra.mxu0 0
          %447 = vmatprep.subr.bf16.mxu0 0
          %448 = vmatpush2.bf16.msra.mxu0 0
          %449 = vmatprep.mubr.bf16.mxu0 0
          %450 = vmatmul.mubr.bf16.gmra.mxu0 %v313
          %v451 = vpop.f32.mrf.mxu0
          %v452 = vadd.f32 0.0, %v451
          %v453 = vpop.f32.mrf.mxu0
          %v454 = vadd.f32 0.0, %v453
          %v455 = vpop.f32.mrf.mxu0
          %v456 = vadd.f32 0.0, %v455
          %v457 = vpop.f32.mrf.mxu0
          %v458 = vadd.f32 0.0, %v457
          %459 = vmatprep.mubr.bf16.mxu0 0
          %460 = vmatmul.mubr.bf16.gmra.mxu0 %v314
          %v461 = vpop.f32.mrf.mxu0
          %v462 = vadd.f32 0.0, %v461
          %v463 = vpop.f32.mrf.mxu0
          %v464 = vadd.f32 0.0, %v463
          %v465 = vpop.f32.mrf.mxu0
          %v466 = vadd.f32 0.0, %v465
          %v467 = vpop.f32.mrf.mxu0
          %v468 = vadd.f32 0.0, %v467
          %469 = vmatprep.mubr.bf16.mxu0 0
          %470 = vmatmul.mubr.bf16.gmra.mxu0 %v315
          %v471 = vpop.f32.mrf.mxu0
          %v472 = vadd.f32 0.0, %v471
          %v473 = vpop.f32.mrf.mxu0
          %v474 = vadd.f32 0.0, %v473
          %v475 = vpop.f32.mrf.mxu0
          %v476 = vadd.f32 0.0, %v475
          %v477 = vpop.f32.mrf.mxu0
          %v478 = vadd.f32 0.0, %v477
          %479 = vmatprep.mubr.bf16.mxu0 0
          %480 = vmatmul.mubr.bf16.gmra.mxu0 %v316
          %v481 = vpop.f32.mrf.mxu0
          %v482 = vadd.f32 0.0, %v481
          %v483 = vpop.f32.mrf.mxu0
          %v484 = vadd.f32 0.0, %v483
          %v485 = vpop.f32.mrf.mxu0
          %v486 = vadd.f32 0.0, %v485
          %v487 = vpop.f32.mrf.mxu0
          %v488 = vadd.f32 0.0, %v487
          %489 = vmatprep.mubr.bf16.mxu0 0
          %490 = vmatmul.mubr.bf16.gmra.mxu0 %v317
          %v491 = vpop.f32.mrf.mxu0
          %v492 = vadd.f32 0.0, %v491
          %v493 = vpop.f32.mrf.mxu0
          %v494 = vadd.f32 0.0, %v493
          %v495 = vpop.f32.mrf.mxu0
          %v496 = vadd.f32 0.0, %v495
          %v497 = vpop.f32.mrf.mxu0
          %v498 = vadd.f32 0.0, %v497
          %499 = vmatprep.mubr.bf16.mxu0 0
          %500 = vmatmul.mubr.bf16.gmra.mxu0 %v318
          %v501 = vpop.f32.mrf.mxu0
          %v502 = vadd.f32 0.0, %v501
          %v503 = vpop.f32.mrf.mxu0
          %v504 = vadd.f32 0.0, %v503
          %v505 = vpop.f32.mrf.mxu0
          %v506 = vadd.f32 0.0, %v505
          %v507 = vpop.f32.mrf.mxu0
          %v508 = vadd.f32 0.0, %v507
          %509 = vmatprep.mubr.bf16.mxu0 0
          %510 = vmatmul.mubr.bf16.gmra.mxu0 %v319
          %v511 = vpop.f32.mrf.mxu0
          %v512 = vadd.f32 0.0, %v511
          %v513 = vpop.f32.mrf.mxu0
          %v514 = vadd.f32 0.0, %v513
          %v515 = vpop.f32.mrf.mxu0
          %v516 = vadd.f32 0.0, %v515
          %v517 = vpop.f32.mrf.mxu0
          %v518 = vadd.f32 0.0, %v517
          %519 = vmatprep.mubr.bf16.mxu0 0
          %520 = vmatmul.mubr.bf16.gmra.mxu0 %v320
          %v521 = vpop.f32.mrf.mxu0
          %v522 = vadd.f32 0.0, %v521
          %v523 = vpop.f32.mrf.mxu0
          %v524 = vadd.f32 0.0, %v523
          %v525 = vpop.f32.mrf.mxu0
          %v526 = vadd.f32 0.0, %v525
          %v527 = vpop.f32.mrf.mxu0
          %v528 = vadd.f32 0.0, %v527
          %529 = vdwg.mxu0
          %s530 = sshra.s32 %s291, 3
          %s531 = sand.u32 %s291, 7
          %s532 = smul.u32 %s530, 2
          %s533 = smul.addr %s532, 8
          %s534 = scalar_lea.vmem [#allocation2], %s533
          %535 = vst [vmem:[%s534] sm:$0xff] %v452
          %536 = vst [vmem:[%s534 + $0x8] sm:$0xff] %v454
          %537 = vst [vmem:[%s534 + $0x10] sm:$0xff] %v456
          %538 = vst [vmem:[%s534 + $0x18] sm:$0xff] %v458
          %539 = vst [vmem:[%s534 + $0x20] sm:$0xff] %v462
          %540 = vst [vmem:[%s534 + $0x28] sm:$0xff] %v464
          %541 = vst [vmem:[%s534 + $0x30] sm:$0xff] %v466
          %542 = vst [vmem:[%s534 + $0x38] sm:$0xff] %v468
          %543 = vst [vmem:[%s534 + $0x40] sm:$0xff] %v472
          %544 = vst [vmem:[%s534 + $0x48] sm:$0xff] %v474
          %545 = vst [vmem:[%s534 + $0x50] sm:$0xff] %v476
          %546 = vst [vmem:[%s534 + $0x58] sm:$0xff] %v478
          %547 = vst [vmem:[%s534 + $0x60] sm:$0xff] %v482
          %548 = vst [vmem:[%s534 + $0x68] sm:$0xff] %v484
          %549 = vst [vmem:[%s534 + $0x70] sm:$0xff] %v486
          %550 = vst [vmem:[%s534 + $0x78] sm:$0xff] %v488
          %551 = vst [vmem:[%s534 + $0x80] sm:$0xff] %v492
          %552 = vst [vmem:[%s534 + $0x88] sm:$0xff] %v494
          %553 = vst [vmem:[%s534 + $0x90] sm:$0xff] %v496
          %554 = vst [vmem:[%s534 + $0x98] sm:$0xff] %v498
          %555 = vst [vmem:[%s534 + $0xa0] sm:$0xff] %v502
          %556 = vst [vmem:[%s534 + $0xa8] sm:$0xff] %v504
          %557 = vst [vmem:[%s534 + $0xb0] sm:$0xff] %v506
          %558 = vst [vmem:[%s534 + $0xb8] sm:$0xff] %v508
          %559 = vst [vmem:[%s534 + $0xc0] sm:$0xff] %v512
          %560 = vst [vmem:[%s534 + $0xc8] sm:$0xff] %v514
          %561 = vst [vmem:[%s534 + $0xd0] sm:$0xff] %v516
          %562 = vst [vmem:[%s534 + $0xd8] sm:$0xff] %v518
          %563 = vst [vmem:[%s534 + $0xe0] sm:$0xff] %v522
          %564 = vst [vmem:[%s534 + $0xe8] sm:$0xff] %v524
          %565 = vst [vmem:[%s534 + $0xf0] sm:$0xff] %v526
          %566 = vst [vmem:[%s534 + $0xf8] sm:$0xff] %v528
          %p567 = scmp.eq.s32.totalorder %s27, 0
          // Predicated region
          $region61: #{tpu_custom_call.1} parent=59 // pred_check
            %p568 = pneg %p567
          $region62: #{tpu_custom_call.1} parent=59 // pred_check_branch
            %570 = sbr.rel (%p568) target = $region64
          $region63: #{tpu_custom_call.1} parent=59 // pred_region
            %v571 = vlaneseq
            %vm572 = vcmp.ge.s32.totalorder %v571, 0
            %vm573 = vcmp.lt.s32.totalorder %v571, 256
            %vm574 = vmand %vm572, %vm573
            %575 = vst.msk [vmem:[#allocation3] sm:$0x3] %vm574, 0.0
            %576 = vst.msk [vmem:[#allocation4] sm:$0x3] %vm574, 0.0
          $region64: #{tpu_custom_call.1} parent=59 // pred_fallthru
            _
          %v577 = vld [vmem:[#allocation3] sm:$0x3]
          %v578 = vadd.f32 %v452, %v456
          %v579 = vadd.f32 %v578, %v462
          %v580 = vadd.f32 %v579, %v466
          %v581 = vadd.f32 %v580, %v472
          %v582 = vadd.f32 %v581, %v476
          %v583 = vadd.f32 %v582, %v482
          %v584 = vadd.f32 %v583, %v486
          %v585 = vadd.f32 %v584, %v492
          %v586 = vadd.f32 %v585, %v496
          %v587 = vadd.f32 %v586, %v502
          %v588 = vadd.f32 %v587, %v506
          %v589 = vadd.f32 %v588, %v512
          %v590 = vadd.f32 %v589, %v516
          %v591 = vadd.f32 %v590, %v522
          %v592 = vadd.f32 %v591, %v526
          %v593 = vrot.slane %v592, 4
          %v594 = vadd.f32 %v592, %v593
          %v595 = vrot.slane %v594, 2
          %v596 = vadd.f32 %v594, %v595
          %v597 = vrot.slane %v596, 1
          %v598 = vadd.f32 %v596, %v597
          %v599 = vadd.f32 %v454, %v458
          %v600 = vadd.f32 %v599, %v464
          %v601 = vadd.f32 %v600, %v468
          %v602 = vadd.f32 %v601, %v474
          %v603 = vadd.f32 %v602, %v478
          %v604 = vadd.f32 %v603, %v484
          %v605 = vadd.f32 %v604, %v488
          %v606 = vadd.f32 %v605, %v494
          %v607 = vadd.f32 %v606, %v498
          %v608 = vadd.f32 %v607, %v504
          %v609 = vadd.f32 %v608, %v508
          %v610 = vadd.f32 %v609, %v514
          %v611 = vadd.f32 %v610, %v518
          %v612 = vadd.f32 %v611, %v524
          %v613 = vadd.f32 %v612, %v528
          %v614 = vrot.slane %v613, 4
          %v615 = vadd.f32 %v613, %v614
          %v616 = vrot.slane %v615, 2
          %v617 = vadd.f32 %v615, %v616
          %v618 = vrot.slane %v617, 1
          %v619 = vadd.f32 %v617, %v618
          %v622 = vcombine.low %v598, %v619
          %v624 = vunpack.c.l.s4 1966171168
          %v625 = vunpack.c.0.s8 %v624
          %v626 = vlaneseq
          %v627 = vshrl.u32 %v626, 7
          %v628 = vsub.s32 %v625, %v627
          %v629 = vrot.slane %v622, %v628
          %v631 = vunpack.c.l.s4 1966171168
          %v632 = vunpack.c.0.s8 %v631
          %v633 = vlaneseq
          %v634 = vshrl.u32 %v633, 7
          %v635 = vsub.s32 %v632, %v634
          %v636 = vrot.slane %v629, %v635
          %v638 = vadd.f32 %v577, %v636
          %v639 = vlaneseq
          %vm640 = vcmp.ge.s32.totalorder %v639, 0
          %vm641 = vcmp.lt.s32.totalorder %v639, 256
          %vm642 = vmand %vm640, %vm641
          %643 = vst.msk [vmem:[#allocation3] sm:$0x3] %vm642, %v638
          %v644 = vld [vmem:[#allocation4] sm:$0x3]
          %v645 = vmul.f32 %v452, %v452
          %v646 = vmul.f32 %v454, %v454
          %v647 = vmul.f32 %v456, %v456
          %v648 = vmul.f32 %v458, %v458
          %v649 = vmul.f32 %v462, %v462
          %v650 = vmul.f32 %v464, %v464
          %v651 = vmul.f32 %v466, %v466
          %v652 = vmul.f32 %v468, %v468
          %v653 = vmul.f32 %v472, %v472
          %v654 = vmul.f32 %v474, %v474
          %v655 = vmul.f32 %v476, %v476
          %v656 = vmul.f32 %v478, %v478
          %v657 = vmul.f32 %v482, %v482
          %v658 = vmul.f32 %v484, %v484
          %v659 = vmul.f32 %v486, %v486
          %v660 = vmul.f32 %v488, %v488
          %v661 = vmul.f32 %v492, %v492
          %v662 = vmul.f32 %v494, %v494
          %v663 = vmul.f32 %v496, %v496
          %v664 = vmul.f32 %v498, %v498
          %v665 = vmul.f32 %v502, %v502
          %v666 = vmul.f32 %v504, %v504
          %v667 = vmul.f32 %v506, %v506
          %v668 = vmul.f32 %v508, %v508
          %v669 = vmul.f32 %v512, %v512
          %v670 = vmul.f32 %v514, %v514
          %v671 = vmul.f32 %v516, %v516
          %v672 = vmul.f32 %v518, %v518
          %v673 = vmul.f32 %v522, %v522
          %v674 = vmul.f32 %v524, %v524
          %v675 = vmul.f32 %v526, %v526
          %v676 = vmul.f32 %v528, %v528
          %v677 = vadd.f32 %v645, %v647
          %v678 = vadd.f32 %v677, %v649
          %v679 = vadd.f32 %v678, %v651
          %v680 = vadd.f32 %v679, %v653
          %v681 = vadd.f32 %v680, %v655
          %v682 = vadd.f32 %v681, %v657
          %v683 = vadd.f32 %v682, %v659
          %v684 = vadd.f32 %v683, %v661
          %v685 = vadd.f32 %v684, %v663
          %v686 = vadd.f32 %v685, %v665
          %v687 = vadd.f32 %v686, %v667
          %v688 = vadd.f32 %v687, %v669
          %v689 = vadd.f32 %v688, %v671
          %v690 = vadd.f32 %v689, %v673
          %v691 = vadd.f32 %v690, %v675
          %v692 = vrot.slane %v691, 4
          %v693 = vadd.f32 %v691, %v692
          %v694 = vrot.slane %v693, 2
          %v695 = vadd.f32 %v693, %v694
          %v696 = vrot.slane %v695, 1
          %v697 = vadd.f32 %v695, %v696
          %v698 = vadd.f32 %v646, %v648
          %v699 = vadd.f32 %v698, %v650
          %v700 = vadd.f32 %v699, %v652
          %v701 = vadd.f32 %v700, %v654
          %v702 = vadd.f32 %v701, %v656
          %v703 = vadd.f32 %v702, %v658
          %v704 = vadd.f32 %v703, %v660
          %v705 = vadd.f32 %v704, %v662
          %v706 = vadd.f32 %v705, %v664
          %v707 = vadd.f32 %v706, %v666
          %v708 = vadd.f32 %v707, %v668
          %v709 = vadd.f32 %v708, %v670
          %v710 = vadd.f32 %v709, %v672
          %v711 = vadd.f32 %v710, %v674
          %v712 = vadd.f32 %v711, %v676
          %v713 = vrot.slane %v712, 4
          %v714 = vadd.f32 %v712, %v713
          %v715 = vrot.slane %v714, 2
          %v716 = vadd.f32 %v714, %v715
          %v717 = vrot.slane %v716, 1
          %v718 = vadd.f32 %v716, %v717
          %v721 = vcombine.low %v697, %v718
          %v723 = vunpack.c.l.s4 1966171168
          %v724 = vunpack.c.0.s8 %v723
          %v725 = vlaneseq
          %v726 = vshrl.u32 %v725, 7
          %v727 = vsub.s32 %v724, %v726
          %v728 = vrot.slane %v721, %v727
          %v730 = vunpack.c.l.s4 1966171168
          %v731 = vunpack.c.0.s8 %v730
          %v732 = vlaneseq
          %v733 = vshrl.u32 %v732, 7
          %v734 = vsub.s32 %v731, %v733
          %v735 = vrot.slane %v728, %v734
          %v737 = vadd.f32 %v644, %v735
          %738 = vst.msk [vmem:[#allocation4] sm:$0x3] %vm642, %v737
        $region60: #{tpu_custom_call.1} parent=43 // pred_fallthru
          _
        %p739 = scmp.eq.s32.totalorder %s26, 1
        // Predicated region
        $region65: #{tpu_custom_call.1} parent=43 // pred_check
          %p740 = pneg %p739
        $region66: #{tpu_custom_call.1} parent=43 // pred_check_branch
          %742 = sbr.rel (%p740) target = $region68
        $region67: #{tpu_custom_call.1} parent=43 // pred_region
          %p743 = scmp.eq.s32.totalorder %s27, 0
          // Predicated region
          $region69: #{tpu_custom_call.1} parent=67 // pred_check
            %p744 = pneg %p743
          $region70: #{tpu_custom_call.1} parent=67 // pred_check_branch
            %746 = sbr.rel (%p744) target = $region72
          $region71: #{tpu_custom_call.1} parent=67 // pred_region
            %v747 = vld [vmem:[#allocation3] sm:$0x3]
            %v748 = vmul.f32 %v747, 0.00390625
            %v749 = vld [vmem:[#allocation4] sm:$0x3]
            %v750 = vmul.f32 %v749, 0.00390625
            %v751 = vmul.f32 %v748, %v748
            %v752 = vsub.f32 %v750, %v751
            %v753 = vmax.f32 %v752, 0.0
            %v754 = vadd.f32 %v753, 1e-05
            %v755 = vrsqrt.pop %v754
            %v756 = vld [vmem:[%s2] sm:$0x3]
            %v757 = vmul.f32 %v756, %v755
            %v758 = vld [vmem:[%s3] sm:$0x3]
            %v759 = vmul.f32 %v748, %v757
            %v760 = vsub.f32 %v758, %v759
            %v761 = vlaneseq
            %vm762 = vcmp.ge.s32.totalorder %v761, 0
            %vm763 = vcmp.lt.s32.totalorder %v761, 256
            %vm764 = vmand %vm762, %vm763
            %765 = vst.msk [vmem:[#allocation3] sm:$0x3] %vm764, %v757
            %766 = vst.msk [vmem:[#allocation4] sm:$0x3] %vm764, %v760
          $region72: #{tpu_custom_call.1} parent=67 // pred_fallthru
            _
          %s767 = sshra.s32 %s291, 3
          %s768 = sand.u32 %s291, 7
          %s769 = smul.u32 %s767, 2
          %s770 = smul.addr %s769, 8
          %s771 = scalar_lea.vmem [#allocation2], %s770
          %v772 = vld [vmem:[%s771] sm:$0xff]
          %v773 = vld [vmem:[%s771 + $0x8] sm:$0xff]
          %v774 = vld [vmem:[%s771 + $0x10] sm:$0xff]
          %v775 = vld [vmem:[%s771 + $0x18] sm:$0xff]
          %v776 = vld [vmem:[%s771 + $0x20] sm:$0xff]
          %v777 = vld [vmem:[%s771 + $0x28] sm:$0xff]
          %v778 = vld [vmem:[%s771 + $0x30] sm:$0xff]
          %v779 = vld [vmem:[%s771 + $0x38] sm:$0xff]
          %v780 = vld [vmem:[%s771 + $0x40] sm:$0xff]
          %v781 = vld [vmem:[%s771 + $0x48] sm:$0xff]
          %v782 = vld [vmem:[%s771 + $0x50] sm:$0xff]
          %v783 = vld [vmem:[%s771 + $0x58] sm:$0xff]
          %v784 = vld [vmem:[%s771 + $0x60] sm:$0xff]
          %v785 = vld [vmem:[%s771 + $0x68] sm:$0xff]
          %v786 = vld [vmem:[%s771 + $0x70] sm:$0xff]
          %v787 = vld [vmem:[%s771 + $0x78] sm:$0xff]
          %v788 = vld [vmem:[%s771 + $0x80] sm:$0xff]
          %v789 = vld [vmem:[%s771 + $0x88] sm:$0xff]
          %v790 = vld [vmem:[%s771 + $0x90] sm:$0xff]
          %v791 = vld [vmem:[%s771 + $0x98] sm:$0xff]
          %v792 = vld [vmem:[%s771 + $0xa0] sm:$0xff]
          %v793 = vld [vmem:[%s771 + $0xa8] sm:$0xff]
          %v794 = vld [vmem:[%s771 + $0xb0] sm:$0xff]
          %v795 = vld [vmem:[%s771 + $0xb8] sm:$0xff]
          %v796 = vld [vmem:[%s771 + $0xc0] sm:$0xff]
          %v797 = vld [vmem:[%s771 + $0xc8] sm:$0xff]
          %v798 = vld [vmem:[%s771 + $0xd0] sm:$0xff]
          %v799 = vld [vmem:[%s771 + $0xd8] sm:$0xff]
          %v800 = vld [vmem:[%s771 + $0xe0] sm:$0xff]
          %v801 = vld [vmem:[%s771 + $0xe8] sm:$0xff]
          %v802 = vld [vmem:[%s771 + $0xf0] sm:$0xff]
          %v803 = vld [vmem:[%s771 + $0xf8] sm:$0xff]
          %v804 = vld [vmem:[#allocation3] sm:$0x3]
          %v806 = vlaneseq
          %v807 = vshrl.u32 %v806, 7
          %v808 = vsub.s32 0, %v807
          %v809 = vrot.slane %v804, %v808
          %v810 = vlaneseq
          %v811 = vshrl.u32 %v810, 7
          %v812 = vsub.s32 1, %v811
          %v813 = vrot.slane %v804, %v812
          %v816 = vmul.f32 %v772, %v809
          %v817 = vmul.f32 %v773, %v813
          %v818 = vmul.f32 %v774, %v809
          %v819 = vmul.f32 %v775, %v813
          %v820 = vmul.f32 %v776, %v809
          %v821 = vmul.f32 %v777, %v813
          %v822 = vmul.f32 %v778, %v809
          %v823 = vmul.f32 %v779, %v813
          %v824 = vmul.f32 %v780, %v809
          %v825 = vmul.f32 %v781, %v813
          %v826 = vmul.f32 %v782, %v809
          %v827 = vmul.f32 %v783, %v813
          %v828 = vmul.f32 %v784, %v809
          %v829 = vmul.f32 %v785, %v813
          %v830 = vmul.f32 %v786, %v809
          %v831 = vmul.f32 %v787, %v813
          %v832 = vmul.f32 %v788, %v809
          %v833 = vmul.f32 %v789, %v813
          %v834 = vmul.f32 %v790, %v809
          %v835 = vmul.f32 %v791, %v813
          %v836 = vmul.f32 %v792, %v809
          %v837 = vmul.f32 %v793, %v813
          %v838 = vmul.f32 %v794, %v809
          %v839 = vmul.f32 %v795, %v813
          %v840 = vmul.f32 %v796, %v809
          %v841 = vmul.f32 %v797, %v813
          %v842 = vmul.f32 %v798, %v809
          %v843 = vmul.f32 %v799, %v813
          %v844 = vmul.f32 %v800, %v809
          %v845 = vmul.f32 %v801, %v813
          %v846 = vmul.f32 %v802, %v809
          %v847 = vmul.f32 %v803, %v813
          %v848 = vld [vmem:[#allocation4] sm:$0x3]
          %v850 = vlaneseq
          %v851 = vshrl.u32 %v850, 7
          %v852 = vsub.s32 0, %v851
          %v853 = vrot.slane %v848, %v852
          %v854 = vlaneseq
          %v855 = vshrl.u32 %v854, 7
          %v856 = vsub.s32 1, %v855
          %v857 = vrot.slane %v848, %v856
          %v860 = vadd.f32 %v816, %v853
          %v861 = vadd.f32 %v817, %v857
          %v862 = vadd.f32 %v818, %v853
          %v863 = vadd.f32 %v819, %v857
          %v864 = vadd.f32 %v820, %v853
          %v865 = vadd.f32 %v821, %v857
          %v866 = vadd.f32 %v822, %v853
          %v867 = vadd.f32 %v823, %v857
          %v868 = vadd.f32 %v824, %v853
          %v869 = vadd.f32 %v825, %v857
          %v870 = vadd.f32 %v826, %v853
          %v871 = vadd.f32 %v827, %v857
          %v872 = vadd.f32 %v828, %v853
          %v873 = vadd.f32 %v829, %v857
          %v874 = vadd.f32 %v830, %v853
          %v875 = vadd.f32 %v831, %v857
          %v876 = vadd.f32 %v832, %v853
          %v877 = vadd.f32 %v833, %v857
          %v878 = vadd.f32 %v834, %v853
          %v879 = vadd.f32 %v835, %v857
          %v880 = vadd.f32 %v836, %v853
          %v881 = vadd.f32 %v837, %v857
          %v882 = vadd.f32 %v838, %v853
          %v883 = vadd.f32 %v839, %v857
          %v884 = vadd.f32 %v840, %v853
          %v885 = vadd.f32 %v841, %v857
          %v886 = vadd.f32 %v842, %v853
          %v887 = vadd.f32 %v843, %v857
          %v888 = vadd.f32 %v844, %v853
          %v889 = vadd.f32 %v845, %v857
          %v890 = vadd.f32 %v846, %v853
          %v891 = vadd.f32 %v847, %v857
          %v892 = vmax.f32 %v860, 0.0
          %v893 = vmax.f32 %v861, 0.0
          %v894 = vmax.f32 %v862, 0.0
          %v895 = vmax.f32 %v863, 0.0
          %v896 = vmax.f32 %v864, 0.0
          %v897 = vmax.f32 %v865, 0.0
          %v898 = vmax.f32 %v866, 0.0
          %v899 = vmax.f32 %v867, 0.0
          %v900 = vmax.f32 %v868, 0.0
          %v901 = vmax.f32 %v869, 0.0
          %v902 = vmax.f32 %v870, 0.0
          %v903 = vmax.f32 %v871, 0.0
          %v904 = vmax.f32 %v872, 0.0
          %v905 = vmax.f32 %v873, 0.0
          %v906 = vmax.f32 %v874, 0.0
          %v907 = vmax.f32 %v875, 0.0
          %v908 = vmax.f32 %v876, 0.0
          %v909 = vmax.f32 %v877, 0.0
          %v910 = vmax.f32 %v878, 0.0
          %v911 = vmax.f32 %v879, 0.0
          %v912 = vmax.f32 %v880, 0.0
          %v913 = vmax.f32 %v881, 0.0
          %v914 = vmax.f32 %v882, 0.0
          %v915 = vmax.f32 %v883, 0.0
          %v916 = vmax.f32 %v884, 0.0
          %v917 = vmax.f32 %v885, 0.0
          %v918 = vmax.f32 %v886, 0.0
          %v919 = vmax.f32 %v887, 0.0
          %v920 = vmax.f32 %v888, 0.0
          %v921 = vmax.f32 %v889, 0.0
          %v922 = vmax.f32 %v890, 0.0
          %v923 = vmax.f32 %v891, 0.0
          %v924 = vpack.c.bf16 %v894, %v892
          %v925 = vpack.c.bf16 %v895, %v893
          %v926 = vpack.c.bf16 %v898, %v896
          %v927 = vpack.c.bf16 %v899, %v897
          %v928 = vpack.c.bf16 %v902, %v900
          %v929 = vpack.c.bf16 %v903, %v901
          %v930 = vpack.c.bf16 %v906, %v904
          %v931 = vpack.c.bf16 %v907, %v905
          %v932 = vpack.c.bf16 %v910, %v908
          %v933 = vpack.c.bf16 %v911, %v909
          %v934 = vpack.c.bf16 %v914, %v912
          %v935 = vpack.c.bf16 %v915, %v913
          %v936 = vpack.c.bf16 %v918, %v916
          %v937 = vpack.c.bf16 %v919, %v917
          %v938 = vpack.c.bf16 %v922, %v920
          %v939 = vpack.c.bf16 %v923, %v921
          %v940 = vld [vmem:[#allocation10] sm:$0xf]
          %v941 = vld [vmem:[#allocation10 + $0x4] sm:$0xf]
          %v942 = vld [vmem:[#allocation10 + $0x8] sm:$0xf]
          %v943 = vld [vmem:[#allocation10 + $0xc] sm:$0xf]
          %v944 = vld [vmem:[#allocation10 + $0x10] sm:$0xf]
          %v945 = vld [vmem:[#allocation10 + $0x14] sm:$0xf]
          %v946 = vld [vmem:[#allocation10 + $0x18] sm:$0xf]
          %v947 = vld [vmem:[#allocation10 + $0x1c] sm:$0xf]
          %v948 = vld [vmem:[#allocation10 + $0x20] sm:$0xf]
          %v949 = vld [vmem:[#allocation10 + $0x24] sm:$0xf]
          %v950 = vld [vmem:[#allocation10 + $0x28] sm:$0xf]
          %v951 = vld [vmem:[#allocation10 + $0x2c] sm:$0xf]
          %v952 = vld [vmem:[#allocation10 + $0x30] sm:$0xf]
          %v953 = vld [vmem:[#allocation10 + $0x34] sm:$0xf]
          %v954 = vld [vmem:[#allocation10 + $0x38] sm:$0xf]
          %v955 = vld [vmem:[#allocation10 + $0x3c] sm:$0xf]
          %v956 = vld [vmem:[#allocation10 + $0x40] sm:$0xf]
          %v957 = vld [vmem:[#allocation10 + $0x44] sm:$0xf]
          %v958 = vld [vmem:[#allocation10 + $0x48] sm:$0xf]
          %v959 = vld [vmem:[#allocation10 + $0x4c] sm:$0xf]
          %v960 = vld [vmem:[#allocation10 + $0x50] sm:$0xf]
          %v961 = vld [vmem:[#allocation10 + $0x54] sm:$0xf]
          %v962 = vld [vmem:[#allocation10 + $0x58] sm:$0xf]
          %v963 = vld [vmem:[#allocation10 + $0x5c] sm:$0xf]
          %v964 = vld [vmem:[#allocation10 + $0x60] sm:$0xf]
          %v965 = vld [vmem:[#allocation10 + $0x64] sm:$0xf]
          %v966 = vld [vmem:[#allocation10 + $0x68] sm:$0xf]
          %v967 = vld [vmem:[#allocation10 + $0x6c] sm:$0xf]
          %v968 = vld [vmem:[#allocation10 + $0x70] sm:$0xf]
          %v969 = vld [vmem:[#allocation10 + $0x74] sm:$0xf]
          %v970 = vld [vmem:[#allocation10 + $0x78] sm:$0xf]
          %v971 = vld [vmem:[#allocation10 + $0x7c] sm:$0xf]
          %v972 = vld [vmem:[%s5] sm:$0x1]
          %v974 = vlaneseq
          %v975 = vshrl.u32 %v974, 7
          %v976 = vsub.s32 0, %v975
          %v977 = vrot.slane %v972, %v976
          %v1011 = vunpack.c.l.b16 %v940
          %v1012 = vunpack.c.l.b16 %v941
          %v1013 = vunpack.c.l.b16 %v942
          %v1014 = vunpack.c.l.b16 %v943
          %v1015 = vunpack.c.l.b16 %v944
          %v1016 = vunpack.c.l.b16 %v945
          %v1017 = vunpack.c.l.b16 %v946
          %v1018 = vunpack.c.l.b16 %v947
          %v1019 = vunpack.c.l.b16 %v948
          %v1020 = vunpack.c.l.b16 %v949
          %v1021 = vunpack.c.l.b16 %v950
          %v1022 = vunpack.c.l.b16 %v951
          %v1023 = vunpack.c.l.b16 %v952
          %v1024 = vunpack.c.l.b16 %v953
          %v1025 = vunpack.c.l.b16 %v954
          %v1026 = vunpack.c.l.b16 %v955
          %v1027 = vunpack.c.l.b16 %v956
          %v1028 = vunpack.c.l.b16 %v957
          %v1029 = vunpack.c.l.b16 %v958
          %v1030 = vunpack.c.l.b16 %v959
          %v1031 = vunpack.c.l.b16 %v960
          %v1032 = vunpack.c.l.b16 %v961
          %v1033 = vunpack.c.l.b16 %v962
          %v1034 = vunpack.c.l.b16 %v963
          %v1035 = vunpack.c.l.b16 %v964
          %v1036 = vunpack.c.l.b16 %v965
          %v1037 = vunpack.c.l.b16 %v966
          %v1038 = vunpack.c.l.b16 %v967
          %v1039 = vunpack.c.l.b16 %v968
          %v1040 = vunpack.c.l.b16 %v969
          %v1041 = vunpack.c.l.b16 %v970
          %v1042 = vunpack.c.l.b16 %v971
          %v1043 = vpack.c.b16 %v1012, %v1011
          %v1044 = vpack.c.b16 %v1014, %v1013
          %v1045 = vpack.c.b16 %v1016, %v1015
          %v1046 = vpack.c.b16 %v1018, %v1017
          %v1047 = vpack.c.b16 %v1020, %v1019
          %v1048 = vpack.c.b16 %v1022, %v1021
          %v1049 = vpack.c.b16 %v1024, %v1023
          %v1050 = vpack.c.b16 %v1026, %v1025
          %v1051 = vpack.c.b16 %v1028, %v1027
          %v1052 = vpack.c.b16 %v1030, %v1029
          %v1053 = vpack.c.b16 %v1032, %v1031
          %v1054 = vpack.c.b16 %v1034, %v1033
          %v1055 = vpack.c.b16 %v1036, %v1035
          %v1056 = vpack.c.b16 %v1038, %v1037
          %v1057 = vpack.c.b16 %v1040, %v1039
          %v1058 = vpack.c.b16 %v1042, %v1041
          %1075 = vmatprep.subr.bf16.mxu0 0
          %1076 = vmatpush1.bf16.msra.mxu0 %v1050
          %1077 = vmatprep.subr.bf16.mxu0 0
          %1078 = vmatpush1.bf16.msra.mxu0 %v1049
          %1079 = vmatprep.subr.bf16.mxu0 0
          %1080 = vmatpush1.bf16.msra.mxu0 %v1048
          %1081 = vmatprep.subr.bf16.mxu0 0
          %1082 = vmatpush1.bf16.msra.mxu0 %v1047
          %1083 = vmatprep.subr.bf16.mxu0 0
          %1084 = vmatpush1.bf16.msra.mxu0 %v1046
          %1085 = vmatprep.subr.bf16.mxu0 0
          %1086 = vmatpush1.bf16.msra.mxu0 %v1045
          %1087 = vmatprep.subr.bf16.mxu0 0
          %1088 = vmatpush1.bf16.msra.mxu0 %v1044
          %1089 = vmatprep.subr.bf16.mxu0 0
          %1090 = vmatpush1.bf16.msra.mxu0 %v1043
          %1091 = vmatprep.subr.bf16.mxu0 0
          %1092 = vmatpush2.bf16.msra.mxu0 %v1058
          %1093 = vmatprep.subr.bf16.mxu0 0
          %1094 = vmatpush2.bf16.msra.mxu0 %v1057
          %1095 = vmatprep.subr.bf16.mxu0 0
          %1096 = vmatpush2.bf16.msra.mxu0 %v1056
          %1097 = vmatprep.subr.bf16.mxu0 0
          %1098 = vmatpush2.bf16.msra.mxu0 %v1055
          %1099 = vmatprep.subr.bf16.mxu0 0
          %1100 = vmatpush2.bf16.msra.mxu0 %v1054
          %1101 = vmatprep.subr.bf16.mxu0 0
          %1102 = vmatpush2.bf16.msra.mxu0 %v1053
          %1103 = vmatprep.subr.bf16.mxu0 0
          %1104 = vmatpush2.bf16.msra.mxu0 %v1052
          %1105 = vmatprep.subr.bf16.mxu0 0
          %1106 = vmatpush2.bf16.msra.mxu0 %v1051
          %1107 = vmatprep.mubr.bf16.mxu0 %v925
          %1108 = vmatmul.mubr.bf16.gmra.mxu0 %v924
          %v1109 = vpop.f32.mrf.mxu0
          %v1110 = vadd.f32 %v977, %v1109
          %v1111 = vpop.f32.mrf.mxu0
          %v1112 = vpop.f32.mrf.mxu0
          %v1113 = vadd.f32 %v977, %v1112
          %v1114 = vpop.f32.mrf.mxu0
          %1115 = vmatprep.mubr.bf16.mxu0 %v927
          %1116 = vmatmul.mubr.bf16.gmra.mxu0 %v926
          %v1117 = vpop.f32.mrf.mxu0
          %v1118 = vadd.f32 %v977, %v1117
          %v1119 = vpop.f32.mrf.mxu0
          %v1120 = vpop.f32.mrf.mxu0
          %v1121 = vadd.f32 %v977, %v1120
          %v1122 = vpop.f32.mrf.mxu0
          %1123 = vmatprep.mubr.bf16.mxu0 %v929
          %1124 = vmatmul.mubr.bf16.gmra.mxu0 %v928
          %v1125 = vpop.f32.mrf.mxu0
          %v1126 = vadd.f32 %v977, %v1125
          %v1127 = vpop.f32.mrf.mxu0
          %v1128 = vpop.f32.mrf.mxu0
          %v1129 = vadd.f32 %v977, %v1128
          %v1130 = vpop.f32.mrf.mxu0
          %1131 = vmatprep.mubr.bf16.mxu0 %v931
          %1132 = vmatmul.mubr.bf16.gmra.mxu0 %v930
          %v1133 = vpop.f32.mrf.mxu0
          %v1134 = vadd.f32 %v977, %v1133
          %v1135 = vpop.f32.mrf.mxu0
          %v1136 = vpop.f32.mrf.mxu0
          %v1137 = vadd.f32 %v977, %v1136
          %v1138 = vpop.f32.mrf.mxu0
          %1139 = vmatprep.mubr.bf16.mxu0 %v933
          %1140 = vmatmul.mubr.bf16.gmra.mxu0 %v932
          %v1141 = vpop.f32.mrf.mxu0
          %v1142 = vadd.f32 %v977, %v1141
          %v1143 = vpop.f32.mrf.mxu0
          %v1144 = vpop.f32.mrf.mxu0
          %v1145 = vadd.f32 %v977, %v1144
          %v1146 = vpop.f32.mrf.mxu0
          %1147 = vmatprep.mubr.bf16.mxu0 %v935
          %1148 = vmatmul.mubr.bf16.gmra.mxu0 %v934
          %v1149 = vpop.f32.mrf.mxu0
          %v1150 = vadd.f32 %v977, %v1149
          %v1151 = vpop.f32.mrf.mxu0
          %v1152 = vpop.f32.mrf.mxu0
          %v1153 = vadd.f32 %v977, %v1152
          %v1154 = vpop.f32.mrf.mxu0
          %1155 = vmatprep.mubr.bf16.mxu0 %v937
          %1156 = vmatmul.mubr.bf16.gmra.mxu0 %v936
          %v1157 = vpop.f32.mrf.mxu0
          %v1158 = vadd.f32 %v977, %v1157
          %v1159 = vpop.f32.mrf.mxu0
          %v1160 = vpop.f32.mrf.mxu0
          %v1161 = vadd.f32 %v977, %v1160
          %v1162 = vpop.f32.mrf.mxu0
          %1163 = vmatprep.mubr.bf16.mxu0 %v939
          %1164 = vmatmul.mubr.bf16.gmra.mxu0 %v938
          %v1165 = vpop.f32.mrf.mxu0
          %v1166 = vadd.f32 %v977, %v1165
          %v1167 = vpop.f32.mrf.mxu0
          %v1168 = vpop.f32.mrf.mxu0
          %v1169 = vadd.f32 %v977, %v1168
          %v1170 = vpop.f32.mrf.mxu0
          %1171 = vdwg.mxu0
          %1172 = vst [vmem:[%s287] sm:$0xff] %v1110
          %1173 = vst [vmem:[%s287 + $0x8] sm:$0xff] %v1113
          %1174 = vst [vmem:[%s287 + $0x10] sm:$0xff] %v1118
          %1175 = vst [vmem:[%s287 + $0x18] sm:$0xff] %v1121
          %1176 = vst [vmem:[%s287 + $0x20] sm:$0xff] %v1126
          %1177 = vst [vmem:[%s287 + $0x28] sm:$0xff] %v1129
          %1178 = vst [vmem:[%s287 + $0x30] sm:$0xff] %v1134
          %1179 = vst [vmem:[%s287 + $0x38] sm:$0xff] %v1137
          %1180 = vst [vmem:[%s287 + $0x40] sm:$0xff] %v1142
          %1181 = vst [vmem:[%s287 + $0x48] sm:$0xff] %v1145
          %1182 = vst [vmem:[%s287 + $0x50] sm:$0xff] %v1150
          %1183 = vst [vmem:[%s287 + $0x58] sm:$0xff] %v1153
          %1184 = vst [vmem:[%s287 + $0x60] sm:$0xff] %v1158
          %1185 = vst [vmem:[%s287 + $0x68] sm:$0xff] %v1161
          %1186 = vst [vmem:[%s287 + $0x70] sm:$0xff] %v1166
          %1187 = vst [vmem:[%s287 + $0x78] sm:$0xff] %v1169
        $region68: #{tpu_custom_call.1} parent=43 // pred_fallthru
          _
        %s1188 = sand.u32 %s170, 1
        %s1189 = scalar_lea.sflag [#allocation7], %s1188
        %s1190 = sand.u32 %s170, 1
        %s1191 = smul.addr %s1190, 128
        %s1192 = scalar_lea.vmem [#allocation11], %s1191
        // Predicated region
        $region73: #{tpu_custom_call.1} parent=43 // pred_check
          %p1193 = pneg %p180
        $region74: #{tpu_custom_call.1} parent=43 // pred_check_branch
          %1195 = sbr.rel (%p1193) target = $region76
        $region75: #{tpu_custom_call.1} parent=43 // pred_region
          %s1196 = smul.u32 %s26, %s27
          %s1197 = smul.u32 16, %s1196
          %s1199 = ssub.s32 2048, 2048
          %1200 = vsyncadd %s1189, %s1199
          %s1201 = smul.addr %s1197, 128
          %s1202 = scalar_lea.hbm %s6, %s1201
          %s1203 = sshll.u32 %s1192, 4
          %s1204 = int_to_ptr.vmem [resolvable:$true] %s1203
          %1209 = dma.vmem_to_hbm [thread:$0]  %s1204, 2048, %s1202, %s1189, 128, 128, 8
        $region76: #{tpu_custom_call.1} parent=43 // pred_fallthru
          _
      $region44: #{tpu_custom_call.1} parent=5 // pred_fallthru
        _
      %p1210 = scmp.le.s32.totalorder 2, %s17
      // Predicated region
      $region77: #{tpu_custom_call.1} parent=5 // pred_check
        %p1211 = pneg %p1210
      $region78: #{tpu_custom_call.1} parent=5 // pred_check_branch
        %1213 = sbr.rel (%p1211) target = $region80
      $region79: #{tpu_custom_call.1} parent=5 // pred_region
        %s1214 = ssub.s32 %s17, 2
        // Predicated region
        $region81: #{tpu_custom_call.1} parent=79 // pred_check
          %p1215 = pneg %p186
        $region82: #{tpu_custom_call.1} parent=79 // pred_check_branch
          %1217 = sbr.rel (%p1215) target = $region84
        $region83: #{tpu_custom_call.1} parent=79 // pred_region
          %s1218 = sand.u32 %s171, 1
          %s1219 = scalar_lea.sflag [#allocation7], %s1218
          %s1220 = sand.u32 %s171, 1
          %s1221 = smul.addr %s1220, 128
          %s1222 = scalar_lea.vmem [#allocation11], %s1221
          %1223 = dma.done %s1219, 2048
        $region84: #{tpu_custom_call.1} parent=79 // pred_fallthru
          _
      $region80: #{tpu_custom_call.1} parent=5 // pred_fallthru
        _
    $region6: #{tpu_custom_call.1} parent=1 // loop_footer
      %s21 = sadd.s32 1, %s17
    $region7: #{tpu_custom_call.1} parent=1 // loop_footer_branch
      %16 = sbr.rel target = $region3
    $region8: #{tpu_custom_call.1} parent=1 // loop_exit
      _
    %1224 = vsyncpa [#allocation6], 1
    %s1225 = scalar_lea.sflag [#allocation6], 1
    %1226 = vsyncpa %s1225, 1
    %1227 = vsyncpa [#allocation9], 1
    %1228 = vsyncpa [#allocation7], 1
    %s1229 = scalar_lea.sflag [#allocation7], 1
    %1230 = vsyncpa %s1229, 1

</llo_original>
